<compile_context>
chip_gen: v5e
topology: v5e:2x2
jax: 0.10.0
libtpu: 0.0.40
codegen_flags: <defaults>
</compile_context>

<pallas_src>
import numpy as np
import jax
import jax.numpy as jnp
from jax.experimental import pallas as pl
from jax.experimental.pallas import tpu as pltpu

PAD = 1  # SparseIdxCubePadImproved(1)


def _cdiv(a, b):
    return -(-a // b)


def _rup(x, m):
    return ((x + m - 1) // m) * m


# --------------------------------------------------------------------------------------
# Host-side cubemap padding-index precompute (numpy) -- mirrors get_padding_indices*
# (spatial-only pixel indices: channel fibers are gathered whole at runtime)
# --------------------------------------------------------------------------------------
def _face_uv_to_dir(face, u, v):
    one = np.ones_like(u)
    if face == 0:   # +X
        return np.stack([one, -v, -u], axis=-1)
    if face == 1:   # -X
        return np.stack([-one, -v, u], axis=-1)
    if face == 2:   # +Y
        return np.stack([u, one, v], axis=-1)
    if face == 3:   # -Y
        return np.stack([u, -one, -v], axis=-1)
    if face == 4:   # +Z
        return np.stack([u, -v, one], axis=-1)
    if face == 5:   # -Z
        return np.stack([-u, -v, -one], axis=-1)
    raise ValueError(face)


def _dir_to_face_uv(d):
    x, y, z = d[..., 0], d[..., 1], d[..., 2]
    ax = np.maximum(np.abs(x), 1e-12)
    ay = np.maximum(np.abs(y), 1e-12)
    az = np.maximum(np.abs(z), 1e-12)
    face = np.zeros(x.shape, np.int64)
    u = np.zeros(x.shape, np.float64)
    v = np.zeros(x.shape, np.float64)

    mx = (ax >= ay) & (ax >= az)
    my = (~mx) & (ay >= az)
    mz = (~mx) & (~my)

    mp = mx & (x > 0); mn = mx & ~(x > 0)
    u = np.where(mp, -z / ax, u); v = np.where(mp, -y / ax, v); face = np.where(mp, 0, face)
    u = np.where(mn,  z / ax, u); v = np.where(mn, -y / ax, v); face = np.where(mn, 1, face)

    mp = my & (y > 0); mn = my & ~(y > 0)
    u = np.where(mp, x / ay, u); v = np.where(mp,  z / ay, v); face = np.where(mp, 2, face)
    u = np.where(mn, x / ay, u); v = np.where(mn, -z / ay, v); face = np.where(mn, 3, face)

    mp = mz & (z > 0); mn = mz & ~(z > 0)
    u = np.where(mp,  x / az, u); v = np.where(mp, -y / az, v); face = np.where(mp, 4, face)
    u = np.where(mn, -x / az, u); v = np.where(mn, -y / az, v); face = np.where(mn, 5, face)
    return face, u, v


def get_padding_indices_np(width, padding):
    wp = width + 2 * padding
    coord = (2.0 * (np.arange(wp) - padding) + 1.0) / width - 1.0
    v, u = np.meshgrid(coord, coord, indexing="ij")  # v = row, u = col
    pixel_idx = np.zeros((6, wp, wp), np.int64)
    face_idx = np.zeros((6, wp, wp), np.int64)
    for f in range(6):
        d = _face_uv_to_dir(f, u, v)
        fo, uo, vo = _dir_to_face_uv(d)
        xs = np.clip(np.floor((uo * 0.5 + 0.5) * width), 0, width - 1).astype(np.int64)
        ys = np.clip(np.floor((vo * 0.5 + 0.5) * width), 0, width - 1).astype(np.int64)
        pixel_idx[f] = ys * width + xs
        face_idx[f] = fo
    return pixel_idx, face_idx


def get_padding_indices_pad_only_np(width, padding):
    pix, face = get_padding_indices_np(width, padding)
    p = padding
    pix_tb = np.concatenate([pix[:, :p, :], pix[:, -p:, :]], axis=1)        # (6, 2p, Wp)
    pix_lr = np.concatenate([pix[:, p:-p, :p], pix[:, p:-p, -p:]], axis=2)  # (6, W, 2p)
    face_tb = np.concatenate([face[:, :p, :], face[:, -p:, :]], axis=1)     # (6, 2p, Wp)
    face_lr = np.concatenate([face[:, p:-p, :p], face[:, p:-p, -p:]], axis=2)  # (6, W, 2p)
    return (pix_tb.astype(np.int32), pix_lr.astype(np.int32),
            face_tb.astype(np.int32), face_lr.astype(np.int32))


# --------------------------------------------------------------------------------------
# JAX glue: SparseIdxCubePadImproved seam gather -- returns only the thin seam strips.
# The padded cube itself is NEVER materialized (neither in HBM nor in the kernel); the
# kernel folds the seams into the separable bilinear transform directly.
# Seam pixels whose neighbor face is absent from to_process are zero-filled, matching
# the torch index_select * mask semantics.
# --------------------------------------------------------------------------------------
def sparse_cube_pad_strips(cube, to_process, batch_size, tables, pad=PAD):
    pix_tb, pix_lr, face_tb, face_lr = (jnp.asarray(t) for t in tables)
    k, c, w, _ = cube.shape
    vals = cube.reshape(k, c, w * w)

    inv = -jnp.ones((6 * batch_size,), jnp.int32)
    inv = inv.at[to_process].set(jnp.arange(k, dtype=jnp.int32))

    def build(face_tab, pix_tab):
        ftab = face_tab[None] + 6 * jnp.arange(batch_size, dtype=jnp.int32).reshape(-1, 1, 1, 1)
        ftab = ftab.reshape((6 * batch_size,) + face_tab.shape[1:])[to_process]   # (k, a, b)
        ftab = inv[ftab]                                                          # -1 = missing face
        ptab = pix_tab[to_process % 6]                                            # (k, a, b)
        mask = ftab >= 0
        fidx = jnp.where(mask, ftab, 0)
        g = vals[fidx, :, ptab]                                                   # (k, a, b, c)
        g = jnp.where(mask[..., None], g, jnp.zeros((), cube.dtype))
        return jnp.moveaxis(g, -1, 1)                                             # (k, c, a, b)

    pad_tb = build(face_tb, pix_tb)   # (k, c, 2*pad, w + 2*pad)   full width incl. corners
    pad_lr = build(face_lr, pix_lr)   # (k, c, w, 2*pad)           middle rows only
    return pad_tb, pad_lr


# --------------------------------------------------------------------------------------
# Bilinear weight matrix: interpolate(scale_factor, align_corners=False) + [crop:-crop]
# --------------------------------------------------------------------------------------
def _bilinear_weight_matrix(in_size, scale, crop):
    out_full = in_size * scale
    out = out_full - 2 * crop
    w = np.zeros((out, in_size), np.float32)
    for i in range(out):
        src = (i + crop + 0.5) / scale - 0.5
        src = max(src, 0.0)
        i0 = int(np.floor(src))
        lam = src - i0
        i0 = min(max(i0, 0), in_size - 1)
        i1 = min(i0 + 1, in_size - 1)
        w[i, i0] += 1.0 - lam
        w[i, i1] += lam
    return w


# --------------------------------------------------------------------------------------
# Generation-aware tiling policy
# --------------------------------------------------------------------------------------
def _tpu_config():
    kind = ""
    try:
        kind = jax.devices()[0].device_kind.lower()
    except Exception:
        pass
    if "v7" in kind:
        # 64 MiB physical VMEM / TC, 2 TCs: tight budget, even #blocks >= 4.
        return dict(gen="v7x", tile_budget=20 << 20, vmem_limit=48 << 20,
                    target_blocks=4, even_blocks=True)
    if "v6" in kind:
        # 128 MiB VMEM, single TC: large tiles, ~4 grid steps for pipeline overlap.
        return dict(gen="v6e", tile_budget=48 << 20, vmem_limit=96 << 20,
                    target_blocks=4, even_blocks=False)
    if "v5" in kind and ("lite" in kind or "5e" in kind):
        return dict(gen="v5e", tile_budget=48 << 20, vmem_limit=96 << 20,
                    target_blocks=4, even_blocks=False)
    return dict(gen="unknown", tile_budget=16 << 20, vmem_limit=32 << 20,
                target_blocks=4, even_blocks=False)


def _vmem_bytes_per_plane(w, wp, ow):
    # (8,128)-padded f32 footprint of one plane of every block, x2 for double buffering
    # on the pipelined in/out blocks, plus live in-kernel values (t3 + out).
    f = 4
    x_blk = _rup(w, 8) * _rup(w, 128)
    tb_blk = _rup(2 * PAD, 8) * _rup(wp, 128)
    lr_blk = _rup(2 * PAD, 8) * _rup(w, 128)
    o_blk = _rup(ow, 8) * _rup(ow, 128)
    wb_blk = _rup(ow, 8) * _rup(w, 128)      # resident batched row-pass weight
    t_blk = _rup(w, 8) * _rup(ow, 128)       # live column-pass intermediate
    return f * (2 * (x_blk + tb_blk + lr_blk + o_blk + wb_blk) + (t_blk + o_blk))


def _pick_tile(kc, w, wp, ow, cfg):
    per_plane = _vmem_bytes_per_plane(w, wp, ow)
    tile_vmem = max(1, cfg["tile_budget"] // per_plane)
    target_blocks = min(cfg["target_blocks"], kc)
    tile = max(1, min(tile_vmem, _cdiv(kc, target_blocks)))
    n_blocks = _cdiv(kc, tile)
    if cfg["even_blocks"] and n_blocks > 1 and n_blocks % 2 == 1:
        n_blocks += 1
        tile = max(1, _cdiv(kc, n_blocks))
        n_blocks = max(n_blocks, _cdiv(kc, tile))
        if n_blocks % 2 == 1:
            n_blocks += 1
    return int(tile), int(n_blocks)


# --------------------------------------------------------------------------------------
# Pallas kernel: fused cubemap padding + separable bilinear upsample + crop,
# written as "core matmuls + seam corrections" (no padded-plane assembly).
#
# per grid step (TILE planes, fused k*c axis):
#   t[i,p,s]   = sum_q x[i,p,q] * wct[q,s]                       (one big 2-D MXU matmul)
#              + L[i,p] * we[0,s] + R[i,p] * we[1,s]             (left/right seam, VPU)
#   u0[i,s]    = sum_b T[i,b] * wft[b,s],  u1 likewise           (top/bottom strips)
#   out[i,r,s] = sum_p wcb[i,r,p] * t[i,p,s]                     (batched MXU matmul,
#                                                                  resident weight)
#              + u0[i,s] * wec[r,0] + u1[i,s] * wec[r,1]         (top/bottom seam, VPU)
# --------------------------------------------------------------------------------------
def _upsample_kernel(x_ref, tb_ref, lr_ref, wct_ref, wft_ref, we_ref, wec_ref, wcb_ref,
                     o_ref):
    tile, w, _ = x_ref.shape
    ow = wct_ref.shape[1]
    high = jax.lax.Precision.HIGHEST

    # ---- column pass core: one big MXU matmul, contraction dim exactly W ----
    x2 = x_ref[...].reshape(tile * w, w)                       # trivial (W % 8 == 0)
    t = jax.lax.dot_general(
        x2, wct_ref[...],
        dimension_numbers=(((1,), (0,)), ((), ())),
        preferred_element_type=jnp.float32, precision=high)    # (TILE*W, OW)
    t3 = t.reshape(tile, w, ow)                                # (TILE, W, OW)

    # ---- left/right seam correction (PAD=1): broadcasted FMAs on the VPU ----
    lr = lr_ref[...]                                           # (TILE, 2, W)
    we = we_ref[...]                                           # (2, OW)
    t3 = (t3
          + lr[:, 0, :, None] * we[None, 0:1, :]
          + lr[:, 1, :, None] * we[None, 1:2, :])

    # ---- top/bottom strip column pass: skinny MXU matmuls over the full padded width ----
    tb = tb_ref[...]                                           # (TILE, 2, Wp)
    u0 = jax.lax.dot_general(
        tb[:, 0, :], wft_ref[...],
        dimension_numbers=(((1,), (0,)), ((), ())),
        preferred_element_type=jnp.float32, precision=high)    # (TILE, OW)
    u1 = jax.lax.dot_general(
        tb[:, 1, :], wft_ref[...],
        dimension_numbers=(((1,), (0,)), ((), ())),
        preferred_element_type=jnp.float32, precision=high)    # (TILE, OW)

    # ---- row pass core: batched matmul against the resident (TILE, OW, W) weight ----
    out = jax.lax.dot_general(
        wcb_ref[...], t3,
        dimension_numbers=(((2,), (1,)), ((0,), (0,))),
        preferred_element_type=jnp.float32, precision=high)    # (TILE, OW, OW)

    # ---- top/bottom seam correction at the output: outer products via broadcasting ----
    wec = wec_ref[...]                                         # (OW, 2)
    out = (out
           + u0[:, None, :] * wec[None, :, 0:1]
           + u1[:, None, :] * wec[None, :, 1:2])

    o_ref[...] = out.astype(o_ref.dtype)


def bilinear_upsample_fused(cube, pad_tb, pad_lr, scale):
    k, c, w, _ = cube.shape
    wp = w + 2 * PAD
    ow = scale * w
    kc = k * c
    if w % 8 != 0:
        # TODO(synk): support non-8-aligned widths (the TILE*W reshape stops being trivial).
        raise NotImplementedError("cube width must be a multiple of 8")

    # ---- exact-shape weights (no in-kernel slicing / zero padding) ----
    wm = _bilinear_weight_matrix(wp, scale, scale)               # (OW, Wp)
    wm_core = np.ascontiguousarray(wm[:, PAD:PAD + w])           # (OW, W)
    wct = jnp.asarray(np.ascontiguousarray(wm_core.T))           # (W, OW)
    wft = jnp.asarray(np.ascontiguousarray(wm.T))                # (Wp, OW)
    we = jnp.asarray(np.stack([wm[:, 0], wm[:, wp - 1]], axis=0))   # (2, OW)  edge cols
    wec = jnp.asarray(np.stack([wm[:, 0], wm[:, wp - 1]], axis=1))  # (OW, 2)

    # ---- fuse the (k, c) plane axis; lane-friendly seam layouts ----
    cube_kc = cube.reshape(kc, w, w)
    tb_kc = pad_tb.reshape(kc, 2 * PAD, wp)                        # (kc, 2, Wp)
    lr_kc = jnp.swapaxes(pad_lr, 2, 3).reshape(kc, 2 * PAD, w)     # (kc, 2, W): W on lanes

    cfg = _tpu_config()
    tile, n_blocks = _pick_tile(kc, w, wp, ow, cfg)
    kcp = tile * n_blocks
    if kcp != kc:  # pad with zero planes so the grid divides evenly (sliced off below)
        pad_n = kcp - kc
        cube_kc = jnp.concatenate([cube_kc, jnp.zeros((pad_n, w, w), cube.dtype)], axis=0)
        tb_kc = jnp.concatenate([tb_kc, jnp.zeros((pad_n, 2 * PAD, wp), cube.dtype)], axis=0)
        lr_kc = jnp.concatenate([lr_kc, jnp.zeros((pad_n, 2 * PAD, w), cube.dtype)], axis=0)

    # Row-pass weight, pre-broadcast ONCE in the wrapper; resident in VMEM across steps.
    wcb = jnp.broadcast_to(jnp.asarray(wm_core)[None], (tile, ow, w))

    flops = 2 * kcp * (w * w * ow + 2 * w * ow + 2 * wp * ow + ow * w * ow + 2 * ow * ow)
    bytes_accessed = 4 * (kcp * (w * w + 2 * wp + 2 * w + ow * ow)
                          + w * ow + wp * ow + 4 * ow + tile * ow * w)

    out = pl.pallas_call(
        _upsample_kernel,
        out_shape=jax.ShapeDtypeStruct((kcp, ow, ow), cube.dtype),
        grid=(n_blocks,),
        in_specs=[
            pl.BlockSpec((tile, w, w), lambda i: (i, 0, 0)),
            pl.BlockSpec((tile, 2 * PAD, wp), lambda i: (i, 0, 0)),
            pl.BlockSpec((tile, 2 * PAD, w), lambda i: (i, 0, 0)),
            pl.BlockSpec((w, ow), lambda i: (0, 0)),       # wct  (resident)
            pl.BlockSpec((wp, ow), lambda i: (0, 0)),      # wft  (resident)
            pl.BlockSpec((2, ow), lambda i: (0, 0)),       # we   (resident)
            pl.BlockSpec((ow, 2), lambda i: (0, 0)),       # wec  (resident)
            pl.BlockSpec((tile, ow, w), lambda i: (0, 0, 0)),  # wcb (resident)
        ],
        out_specs=pl.BlockSpec((tile, ow, ow), lambda i: (i, 0, 0)),
        compiler_params=pltpu.CompilerParams(
            dimension_semantics=("parallel",),
            vmem_limit_bytes=cfg["vmem_limit"]),
        cost_estimate=pl.CostEstimate(flops=flops, transcendentals=0,
                                      bytes_accessed=bytes_accessed),
    )(cube_kc, tb_kc, lr_kc, wct, wft, we, wec, wcb)

    return out[:kc].reshape(k, c, ow, ow)


# --------------------------------------------------------------------------------------
# SparseBilinearUpsample.forward
# --------------------------------------------------------------------------------------
def sparse_bilinear_upsample(x, to_process, batch_size, scale_factor, tables):
    pad_tb, pad_lr = sparse_cube_pad_strips(x, to_process, batch_size, tables)
    y = bilinear_upsample_fused(x, pad_tb, pad_lr, scale_factor)
    return y, to_process, batch_size


if __name__ == "__main__":
    batch_size = 2
    c, w = 4, 16
    scale = 2
    to_process = jnp.asarray([0, 2, 3, 7, 11], dtype=jnp.int32)  # active faces of 6*B = 12
    k = int(to_process.shape[0])

    key = jax.random.PRNGKey(0)
    x = jax.random.normal(key, (k, c, w, w), dtype=jnp.float32)

    tables = get_padding_indices_pad_only_np(w, PAD)

    y, _, _ = sparse_bilinear_upsample(x, to_process, batch_size, scale, tables)
    y = jax.block_until_ready(y)
    assert y.shape == (k, c, scale * w, scale * w), y.shape

    # sanity: fused Pallas kernel (seam-corrected separable bilinear + crop) matches a
    # plain-JAX reference that materializes the padded cube and uses an einsum.
    pad_tb, pad_lr = sparse_cube_pad_strips(x, to_process, batch_size, tables)
    mid = jnp.concatenate([pad_lr[:, :, :, :PAD], x, pad_lr[:, :, :, -PAD:]], axis=3)
    x_pad = jnp.concatenate([pad_tb[:, :, :PAD, :], mid, pad_tb[:, :, -PAD:, :]], axis=2)
    wm = jnp.asarray(_bilinear_weight_matrix(w + 2 * PAD, scale, scale))
    ref = jnp.einsum("op,kcpq,rq->kcor", wm, x_pad, wm,
                     precision=jax.lax.Precision.HIGHEST)
    np.testing.assert_allclose(np.asarray(y), np.asarray(ref), rtol=1e-5, atol=1e-5)

    print("KERNEL_OK")
</pallas_src>

<mosaic_0001>
module attributes {stable_mosaic.version = 11 : i64} {
  func.func @_upsample_kernel(%arg0: i32, %arg1: memref<5x16x16xf32, #tpu.memory_space<vmem>>, %arg2: memref<5x2x18xf32, #tpu.memory_space<vmem>>, %arg3: memref<5x2x16xf32, #tpu.memory_space<vmem>>, %arg4: memref<16x32xf32, #tpu.memory_space<vmem>>, %arg5: memref<18x32xf32, #tpu.memory_space<vmem>>, %arg6: memref<2x32xf32, #tpu.memory_space<vmem>>, %arg7: memref<32x2xf32, #tpu.memory_space<vmem>>, %arg8: memref<5x32x16xf32, #tpu.memory_space<vmem>>, %arg9: memref<5x32x32xf32, #tpu.memory_space<vmem>>) attributes {dimension_semantics = [#tpu.dimension_semantics<parallel>], iteration_bounds = array<i64: 4>, scalar_prefetch = 0 : i64, scratch_operands = 0 : i64, tpu.core_type = #tpu.core_type<tc>, window_params = [{transform_indices = @transform_0, window_bounds = array<i64: 5, 16, 16>}, {transform_indices = @transform_1, window_bounds = array<i64: 5, 2, 18>}, {transform_indices = @transform_2, window_bounds = array<i64: 5, 2, 16>}, {pipeline_mode = #tpu.pipeline_mode<synchronous>, transform_indices = @transform_3, window_bounds = array<i64: 16, 32>}, {pipeline_mode = #tpu.pipeline_mode<synchronous>, transform_indices = @transform_4, window_bounds = array<i64: 18, 32>}, {pipeline_mode = #tpu.pipeline_mode<synchronous>, transform_indices = @transform_5, window_bounds = array<i64: 2, 32>}, {pipeline_mode = #tpu.pipeline_mode<synchronous>, transform_indices = @transform_6, window_bounds = array<i64: 32, 2>}, {pipeline_mode = #tpu.pipeline_mode<synchronous>, transform_indices = @transform_7, window_bounds = array<i64: 5, 32, 16>}, {transform_indices = @transform_8, window_bounds = array<i64: 5, 32, 32>}]} {
    %c0 = arith.constant 0 : index
    %c0_0 = arith.constant 0 : index
    %c0_1 = arith.constant 0 : index
    %0 = vector.load %arg1[%c0, %c0_0, %c0_1] : memref<5x16x16xf32, #tpu.memory_space<vmem>>, vector<5x16x16xf32>
    %1 = vector.shape_cast %0 : vector<5x16x16xf32> to vector<80x16xf32>
    %c0_2 = arith.constant 0 : index
    %c0_3 = arith.constant 0 : index
    %2 = vector.load %arg4[%c0_2, %c0_3] : memref<16x32xf32, #tpu.memory_space<vmem>>, vector<16x32xf32>
    %cst = arith.constant dense<0.000000e+00> : vector<80x32xf32>
    %3 = tpu.matmul %1, %2, %cst {dimension_numbers = #tpu.dot_dimension_numbers<[1], [0], [0], [1], [0, 0, 1, 1], [], []>, precision = #tpu.contract_precision<fp32>} : vector<80x16xf32>, vector<16x32xf32>, vector<80x32xf32> -> vector<80x32xf32>
    %4 = vector.shape_cast %3 : vector<80x32xf32> to vector<5x16x32xf32>
    %c0_4 = arith.constant 0 : index
    %c0_5 = arith.constant 0 : index
    %c0_6 = arith.constant 0 : index
    %5 = vector.load %arg3[%c0_4, %c0_5, %c0_6] : memref<5x2x16xf32, #tpu.memory_space<vmem>>, vector<5x2x16xf32>
    %c0_7 = arith.constant 0 : index
    %c0_8 = arith.constant 0 : index
    %6 = vector.load %arg6[%c0_7, %c0_8] : memref<2x32xf32, #tpu.memory_space<vmem>>, vector<2x32xf32>
    %7 = vector.extract_strided_slice %5 {offsets = [0, 0, 0], sizes = [5, 1, 16], strides = [1, 1, 1]} : vector<5x2x16xf32> to vector<5x1x16xf32>
    %8 = vector.shape_cast %7 : vector<5x1x16xf32> to vector<5x16xf32>
    %9 = vector.shape_cast %8 : vector<5x16xf32> to vector<5x16x1xf32>
    %10 = vector.extract_strided_slice %6 {offsets = [0, 0], sizes = [1, 32], strides = [1, 1]} : vector<2x32xf32> to vector<1x32xf32>
    %11 = vector.shape_cast %10 : vector<1x32xf32> to vector<1x1x32xf32>
    %12 = vector.broadcast %9 : vector<5x16x1xf32> to vector<5x16x32xf32>
    %13 = vector.broadcast %11 : vector<1x1x32xf32> to vector<5x16x32xf32>
    %14 = arith.mulf %12, %13 : vector<5x16x32xf32>
    %15 = arith.addf %4, %14 : vector<5x16x32xf32>
    %16 = vector.extract_strided_slice %5 {offsets = [0, 1, 0], sizes = [5, 1, 16], strides = [1, 1, 1]} : vector<5x2x16xf32> to vector<5x1x16xf32>
    %17 = vector.shape_cast %16 : vector<5x1x16xf32> to vector<5x16xf32>
    %18 = vector.shape_cast %17 : vector<5x16xf32> to vector<5x16x1xf32>
    %19 = vector.extract_strided_slice %6 {offsets = [1, 0], sizes = [1, 32], strides = [1, 1]} : vector<2x32xf32> to vector<1x32xf32>
    %20 = vector.shape_cast %19 : vector<1x32xf32> to vector<1x1x32xf32>
    %21 = vector.broadcast %18 : vector<5x16x1xf32> to vector<5x16x32xf32>
    %22 = vector.broadcast %20 : vector<1x1x32xf32> to vector<5x16x32xf32>
    %23 = arith.mulf %21, %22 : vector<5x16x32xf32>
    %24 = arith.addf %15, %23 : vector<5x16x32xf32>
    %c0_9 = arith.constant 0 : index
    %c0_10 = arith.constant 0 : index
    %c0_11 = arith.constant 0 : index
    %25 = vector.load %arg2[%c0_9, %c0_10, %c0_11] : memref<5x2x18xf32, #tpu.memory_space<vmem>>, vector<5x2x18xf32>
    %26 = vector.extract_strided_slice %25 {offsets = [0, 0, 0], sizes = [5, 1, 18], strides = [1, 1, 1]} : vector<5x2x18xf32> to vector<5x1x18xf32>
    %27 = vector.shape_cast %26 : vector<5x1x18xf32> to vector<5x18xf32>
    %c0_12 = arith.constant 0 : index
    %c0_13 = arith.constant 0 : index
    %28 = vector.load %arg5[%c0_12, %c0_13] : memref<18x32xf32, #tpu.memory_space<vmem>>, vector<18x32xf32>
    %cst_14 = arith.constant dense<0.000000e+00> : vector<5x32xf32>
    %29 = tpu.matmul %27, %28, %cst_14 {dimension_numbers = #tpu.dot_dimension_numbers<[1], [0], [0], [1], [0, 0, 1, 1], [], []>, precision = #tpu.contract_precision<fp32>} : vector<5x18xf32>, vector<18x32xf32>, vector<5x32xf32> -> vector<5x32xf32>
    %30 = vector.extract_strided_slice %25 {offsets = [0, 1, 0], sizes = [5, 1, 18], strides = [1, 1, 1]} : vector<5x2x18xf32> to vector<5x1x18xf32>
    %31 = vector.shape_cast %30 : vector<5x1x18xf32> to vector<5x18xf32>
    %c0_15 = arith.constant 0 : index
    %c0_16 = arith.constant 0 : index
    %32 = vector.load %arg5[%c0_15, %c0_16] : memref<18x32xf32, #tpu.memory_space<vmem>>, vector<18x32xf32>
    %cst_17 = arith.constant dense<0.000000e+00> : vector<5x32xf32>
    %33 = tpu.matmul %31, %32, %cst_17 {dimension_numbers = #tpu.dot_dimension_numbers<[1], [0], [0], [1], [0, 0, 1, 1], [], []>, precision = #tpu.contract_precision<fp32>} : vector<5x18xf32>, vector<18x32xf32>, vector<5x32xf32> -> vector<5x32xf32>
    %c0_18 = arith.constant 0 : index
    %c0_19 = arith.constant 0 : index
    %c0_20 = arith.constant 0 : index
    %34 = vector.load %arg8[%c0_18, %c0_19, %c0_20] : memref<5x32x16xf32, #tpu.memory_space<vmem>>, vector<5x32x16xf32>
    %cst_21 = arith.constant dense<0.000000e+00> : vector<5x32x32xf32>
    %35 = tpu.matmul %34, %24, %cst_21 {dimension_numbers = #tpu.dot_dimension_numbers<[2], [1], [1], [2], [0, 0, 0, 1, 1, 2], [0], [0]>, precision = #tpu.contract_precision<fp32>} : vector<5x32x16xf32>, vector<5x16x32xf32>, vector<5x32x32xf32> -> vector<5x32x32xf32>
    %c0_22 = arith.constant 0 : index
    %c0_23 = arith.constant 0 : index
    %36 = vector.load %arg7[%c0_22, %c0_23] : memref<32x2xf32, #tpu.memory_space<vmem>>, vector<32x2xf32>
    %37 = vector.shape_cast %29 : vector<5x32xf32> to vector<5x1x32xf32>
    %38 = vector.extract_strided_slice %36 {offsets = [0, 0], sizes = [32, 1], strides = [1, 1]} : vector<32x2xf32> to vector<32x1xf32>
    %39 = vector.shape_cast %38 : vector<32x1xf32> to vector<1x32x1xf32>
    %40 = vector.broadcast %37 : vector<5x1x32xf32> to vector<5x32x32xf32>
    %41 = vector.broadcast %39 : vector<1x32x1xf32> to vector<5x32x32xf32>
    %42 = arith.mulf %40, %41 : vector<5x32x32xf32>
    %43 = arith.addf %35, %42 : vector<5x32x32xf32>
    %44 = vector.shape_cast %33 : vector<5x32xf32> to vector<5x1x32xf32>
    %45 = vector.extract_strided_slice %36 {offsets = [0, 1], sizes = [32, 1], strides = [1, 1]} : vector<32x2xf32> to vector<32x1xf32>
    %46 = vector.shape_cast %45 : vector<32x1xf32> to vector<1x32x1xf32>
    %47 = vector.broadcast %44 : vector<5x1x32xf32> to vector<5x32x32xf32>
    %48 = vector.broadcast %46 : vector<1x32x1xf32> to vector<5x32x32xf32>
    %49 = arith.mulf %47, %48 : vector<5x32x32xf32>
    %50 = arith.addf %43, %49 : vector<5x32x32xf32>
    %c0_24 = arith.constant 0 : index
    %c0_25 = arith.constant 0 : index
    %c0_26 = arith.constant 0 : index
    %51 = vector.load %arg9[%c0_24, %c0_25, %c0_26] : memref<5x32x32xf32, #tpu.memory_space<vmem>>, vector<5x32x32xf32>
    tpu.vector_store %arg9[%c0_24, %c0_25, %c0_26], %50 {strides = array<i32>} : memref<5x32x32xf32, #tpu.memory_space<vmem>>, vector<5x32x32xf32>,
    return
  }
  func.func @transform_0(%arg0: i32) -> (i32, i32, i32) {
    %c0_i32 = arith.constant 0 : i32
    %c0_i32_0 = arith.constant 0 : i32
    %c0_i32_1 = arith.constant 0 : i32
    return %arg0, %c0_i32, %c0_i32_0 : i32, i32, i32
  }
  func.func @transform_1(%arg0: i32) -> (i32, i32, i32) {
    %c0_i32 = arith.constant 0 : i32
    %c0_i32_0 = arith.constant 0 : i32
    %c0_i32_1 = arith.constant 0 : i32
    return %arg0, %c0_i32, %c0_i32_0 : i32, i32, i32
  }
  func.func @transform_2(%arg0: i32) -> (i32, i32, i32) {
    %c0_i32 = arith.constant 0 : i32
    %c0_i32_0 = arith.constant 0 : i32
    %c0_i32_1 = arith.constant 0 : i32
    return %arg0, %c0_i32, %c0_i32_0 : i32, i32, i32
  }
  func.func @transform_3(%arg0: i32) -> (i32, i32) {
    %c0_i32 = arith.constant 0 : i32
    %c0_i32_0 = arith.constant 0 : i32
    %c0_i32_1 = arith.constant 0 : i32
    return %c0_i32, %c0_i32_0 : i32, i32
  }
  func.func @transform_4(%arg0: i32) -> (i32, i32) {
    %c0_i32 = arith.constant 0 : i32
    %c0_i32_0 = arith.constant 0 : i32
    %c0_i32_1 = arith.constant 0 : i32
    return %c0_i32, %c0_i32_0 : i32, i32
  }
  func.func @transform_5(%arg0: i32) -> (i32, i32) {
    %c0_i32 = arith.constant 0 : i32
    %c0_i32_0 = arith.constant 0 : i32
    %c0_i32_1 = arith.constant 0 : i32
    return %c0_i32, %c0_i32_0 : i32, i32
  }
  func.func @transform_6(%arg0: i32) -> (i32, i32) {
    %c0_i32 = arith.constant 0 : i32
    %c0_i32_0 = arith.constant 0 : i32
    %c0_i32_1 = arith.constant 0 : i32
    return %c0_i32, %c0_i32_0 : i32, i32
  }
  func.func @transform_7(%arg0: i32) -> (i32, i32, i32) {
    %c0_i32 = arith.constant 0 : i32
    %c0_i32_0 = arith.constant 0 : i32
    %c0_i32_1 = arith.constant 0 : i32
    %c0_i32_2 = arith.constant 0 : i32
    return %c0_i32, %c0_i32_0, %c0_i32_1 : i32, i32, i32
  }
  func.func @transform_8(%arg0: i32) -> (i32, i32, i32) {
    %c0_i32 = arith.constant 0 : i32
    %c0_i32_0 = arith.constant 0 : i32
    %c0_i32_1 = arith.constant 0 : i32
    return %arg0, %c0_i32, %c0_i32_0 : i32, i32, i32
  }
}

</mosaic_0001>

<llo_original>
// kernel: tpu_custom_call.1
$region0: #{tpu_custom_call.1}
  #allocation0 [shape = 'u32[]', space=smem, size = 0x4, offset = 0x4, fixed_abs, tag = 'smem constant byte address 0x4 - core index']
  #allocation1 [shape = 'u32[72,128]{1,0:T(1,128)}', space=vmem, size = 0x9000, scoped, tag = 'internal scratch']
  %s0 = inlined_call_operand.vmem [shape: f32[20,16,16], index: 0, kind: input, shape index: {}]
  %s1 = inlined_call_operand.vmem [shape: f32[20,2,18], index: 1, kind: input, shape index: {}]
  %s2 = inlined_call_operand.vmem [shape: f32[20,2,16], index: 2, kind: input, shape index: {}]
  %s3 = inlined_call_operand.vmem [shape: f32[16,32], index: 3, kind: input, shape index: {}]
  %s4 = inlined_call_operand.vmem [shape: f32[18,32], index: 4, kind: input, shape index: {}]
  %s5 = inlined_call_operand.vmem [shape: f32[2,32], index: 5, kind: input, shape index: {}]
  %s6 = inlined_call_operand.vmem [shape: f32[32,2], index: 6, kind: input, shape index: {}]
  %s7 = inlined_call_operand.vmem [shape: f32[5,32,16], index: 7, kind: input, shape index: {}]
  %s8 = inlined_call_operand.hbm [shape: f32[20,32,32], index: 8, kind: output, shape index: {}]
  %s9 = sld [smem:[#allocation0]]
  $region65: #{tpu_custom_call.1} parent=0
    _
  %s11 = ssub.s32 1, %s9
  %s12 = scalar_select 0, %s11, %s9
  $region1: #{tpu_custom_call.1} parent=0
    #allocation2 [shape = 'u8[163840]{0}', space=vmem, size = 0x28000, scoped, tag = 'output window, operand 0']
    #allocation3 [shape = 's32[2]{0}', space=sflag, size = 0x8, scoped, tag = 'scoped memory for tpu_custom_call.1']
    %13 = vsyncpa [#allocation3], 0
    %s14 = scalar_lea.sflag [#allocation3], 1
    %15 = vsyncpa %s14, 0
    loop: start=0, step=1, limit=6
    $region2: #{tpu_custom_call.1} parent=1 // loop_pre_header
      _
    $region3: #{tpu_custom_call.1} parent=1 // loop_header
      %s17 = sphi 0, %s21
      %p18 = scmp.ge.s32.totalorder %s17, 6
      %s27 = sphi 0, %s29
      %s30 = sphi 0, %s27
      %s31 = sphi 0, %s30
      %s47 = sphi 0, %s31
      %s53 = sphi 0, %s55
      %s56 = sphi 0, %s53
      %s57 = sphi 0, %s56
      %s73 = sphi 0, %s57
      %s79 = sphi 0, %s81
      %s82 = sphi 0, %s79
      %s83 = sphi 0, %s82
      %s99 = sphi 0, %s83
      %s103 = sphi 0, %s103
      %s105 = sphi 0, %s103
      %s106 = sphi 0, %s105
      %s120 = sphi 0, %s106
      %s124 = sphi 0, %s124
      %s126 = sphi 0, %s124
      %s127 = sphi 0, %s126
      %s141 = sphi 0, %s127
      %s145 = sphi 0, %s145
      %s147 = sphi 0, %s145
      %s148 = sphi 0, %s147
      %s162 = sphi 0, %s148
      %s166 = sphi 0, %s166
      %s168 = sphi 0, %s166
      %s169 = sphi 0, %s168
      %s183 = sphi 0, %s169
      %s187 = sphi 0, %s187
      %s189 = sphi 0, %s187
      %s190 = sphi 0, %s189
      %s204 = sphi 0, %s190
      %s210 = sphi 0, %s212
      %s213 = sphi 0, %s210
      %s214 = sphi 0, %s213
      %s230 = sphi 0, %s214
    $region4: #{tpu_custom_call.1} parent=1 // loop_header_branch
      %20 = sbr.rel (%p18) target = $region8
    $region5: #{tpu_custom_call.1} parent=1 // loop_body
      %s22 = ssub.s32 %s17, 1
      %s23 = ssub.s32 %s17, 2
      %s24 = sadd.s32 %s17, 1
      %s25 = ssub.s32 %s17, %s24
      %p26 = scmp.eq.s32.totalorder %s25, 0
      %s28 = sadd.s32 %s27, 1
      %s29 = scalar_select %p26, %s27, %s28
      %p32 = pneg %p26
      %p33 = scmp.eq.s32.totalorder %s17, 3
      %p34 = por %p32, %p33
      %p35 = scmp.ne.s32.totalorder %s27, %s30
      %p36 = scmp.eq.s32.totalorder %s17, 0
      %p37 = por %p35, %p36
      %p38 = scmp.ne.s32.totalorder %s27, %s30
      %p39 = scmp.eq.s32.totalorder %s22, 3
      %p40 = por %p38, %p39
      %p41 = scmp.ne.s32.totalorder %s30, %s31
      %p42 = scmp.eq.s32.totalorder %s22, 0
      %p43 = por %p41, %p42
      %p44 = scmp.ne.s32.totalorder %s30, %s31
      %p45 = scmp.eq.s32.totalorder %s23, 3
      %p46 = por %p44, %p45
      %p48 = scmp.ne.s32.totalorder %s31, %s47
      %p49 = scmp.eq.s32.totalorder %s23, 0
      %p50 = por %p48, %p49
      %s51 = ssub.s32 %s17, %s24
      %p52 = scmp.eq.s32.totalorder %s51, 0
      %s54 = sadd.s32 %s53, 1
      %s55 = scalar_select %p52, %s53, %s54
      %p58 = pneg %p52
      %p59 = scmp.eq.s32.totalorder %s17, 3
      %p60 = por %p58, %p59
      %p61 = scmp.ne.s32.totalorder %s53, %s56
      %p62 = scmp.eq.s32.totalorder %s17, 0
      %p63 = por %p61, %p62
      %p64 = scmp.ne.s32.totalorder %s53, %s56
      %p65 = scmp.eq.s32.totalorder %s22, 3
      %p66 = por %p64, %p65
      %p67 = scmp.ne.s32.totalorder %s56, %s57
      %p68 = scmp.eq.s32.totalorder %s22, 0
      %p69 = por %p67, %p68
      %p70 = scmp.ne.s32.totalorder %s56, %s57
      %p71 = scmp.eq.s32.totalorder %s23, 3
      %p72 = por %p70, %p71
      %p74 = scmp.ne.s32.totalorder %s57, %s73
      %p75 = scmp.eq.s32.totalorder %s23, 0
      %p76 = por %p74, %p75
      %s77 = ssub.s32 %s17, %s24
      %p78 = scmp.eq.s32.totalorder %s77, 0
      %s80 = sadd.s32 %s79, 1
      %s81 = scalar_select %p78, %s79, %s80
      %p84 = pneg %p78
      %p85 = scmp.eq.s32.totalorder %s17, 3
      %p86 = por %p84, %p85
      %p87 = scmp.ne.s32.totalorder %s79, %s82
      %p88 = scmp.eq.s32.totalorder %s17, 0
      %p89 = por %p87, %p88
      %p90 = scmp.ne.s32.totalorder %s79, %s82
      %p91 = scmp.eq.s32.totalorder %s22, 3
      %p92 = por %p90, %p91
      %p93 = scmp.ne.s32.totalorder %s82, %s83
      %p94 = scmp.eq.s32.totalorder %s22, 0
      %p95 = por %p93, %p94
      %p96 = scmp.ne.s32.totalorder %s82, %s83
      %p97 = scmp.eq.s32.totalorder %s23, 3
      %p98 = por %p96, %p97
      %p100 = scmp.ne.s32.totalorder %s83, %s99
      %p101 = scmp.eq.s32.totalorder %s23, 0
      %p102 = por %p100, %p101
      %s104 = sadd.s32 %s103, 1
      %p107 = scmp.eq.s32.totalorder %s17, 3
      %p108 = scmp.ne.s32.totalorder %s103, %s105
      %p109 = scmp.eq.s32.totalorder %s17, 0
      %p110 = por %p108, %p109
      %p111 = scmp.ne.s32.totalorder %s103, %s105
      %p112 = scmp.eq.s32.totalorder %s22, 3
      %p113 = por %p111, %p112
      %p114 = scmp.ne.s32.totalorder %s105, %s106
      %p115 = scmp.eq.s32.totalorder %s22, 0
      %p116 = por %p114, %p115
      %p117 = scmp.ne.s32.totalorder %s105, %s106
      %p118 = scmp.eq.s32.totalorder %s23, 3
      %p119 = por %p117, %p118
      %p121 = scmp.ne.s32.totalorder %s106, %s120
      %p122 = scmp.eq.s32.totalorder %s23, 0
      %p123 = por %p121, %p122
      %s125 = sadd.s32 %s124, 1
      %p128 = scmp.eq.s32.totalorder %s17, 3
      %p129 = scmp.ne.s32.totalorder %s124, %s126
      %p130 = scmp.eq.s32.totalorder %s17, 0
      %p131 = por %p129, %p130
      %p132 = scmp.ne.s32.totalorder %s124, %s126
      %p133 = scmp.eq.s32.totalorder %s22, 3
      %p134 = por %p132, %p133
      %p135 = scmp.ne.s32.totalorder %s126, %s127
      %p136 = scmp.eq.s32.totalorder %s22, 0
      %p137 = por %p135, %p136
      %p138 = scmp.ne.s32.totalorder %s126, %s127
      %p139 = scmp.eq.s32.totalorder %s23, 3
      %p140 = por %p138, %p139
      %p142 = scmp.ne.s32.totalorder %s127, %s141
      %p143 = scmp.eq.s32.totalorder %s23, 0
      %p144 = por %p142, %p143
      %s146 = sadd.s32 %s145, 1
      %p149 = scmp.eq.s32.totalorder %s17, 3
      %p150 = scmp.ne.s32.totalorder %s145, %s147
      %p151 = scmp.eq.s32.totalorder %s17, 0
      %p152 = por %p150, %p151
      %p153 = scmp.ne.s32.totalorder %s145, %s147
      %p154 = scmp.eq.s32.totalorder %s22, 3
      %p155 = por %p153, %p154
      %p156 = scmp.ne.s32.totalorder %s147, %s148
      %p157 = scmp.eq.s32.totalorder %s22, 0
      %p158 = por %p156, %p157
      %p159 = scmp.ne.s32.totalorder %s147, %s148
      %p160 = scmp.eq.s32.totalorder %s23, 3
      %p161 = por %p159, %p160
      %p163 = scmp.ne.s32.totalorder %s148, %s162
      %p164 = scmp.eq.s32.totalorder %s23, 0
      %p165 = por %p163, %p164
      %s167 = sadd.s32 %s166, 1
      %p170 = scmp.eq.s32.totalorder %s17, 3
      %p171 = scmp.ne.s32.totalorder %s166, %s168
      %p172 = scmp.eq.s32.totalorder %s17, 0
      %p173 = por %p171, %p172
      %p174 = scmp.ne.s32.totalorder %s166, %s168
      %p175 = scmp.eq.s32.totalorder %s22, 3
      %p176 = por %p174, %p175
      %p177 = scmp.ne.s32.totalorder %s168, %s169
      %p178 = scmp.eq.s32.totalorder %s22, 0
      %p179 = por %p177, %p178
      %p180 = scmp.ne.s32.totalorder %s168, %s169
      %p181 = scmp.eq.s32.totalorder %s23, 3
      %p182 = por %p180, %p181
      %p184 = scmp.ne.s32.totalorder %s169, %s183
      %p185 = scmp.eq.s32.totalorder %s23, 0
      %p186 = por %p184, %p185
      %s188 = sadd.s32 %s187, 1
      %p191 = scmp.eq.s32.totalorder %s17, 3
      %p192 = scmp.ne.s32.totalorder %s187, %s189
      %p193 = scmp.eq.s32.totalorder %s17, 0
      %p194 = por %p192, %p193
      %p195 = scmp.ne.s32.totalorder %s187, %s189
      %p196 = scmp.eq.s32.totalorder %s22, 3
      %p197 = por %p195, %p196
      %p198 = scmp.ne.s32.totalorder %s189, %s190
      %p199 = scmp.eq.s32.totalorder %s22, 0
      %p200 = por %p198, %p199
      %p201 = scmp.ne.s32.totalorder %s189, %s190
      %p202 = scmp.eq.s32.totalorder %s23, 3
      %p203 = por %p201, %p202
      %p205 = scmp.ne.s32.totalorder %s190, %s204
      %p206 = scmp.eq.s32.totalorder %s23, 0
      %p207 = por %p205, %p206
      %s208 = ssub.s32 %s17, %s24
      %p209 = scmp.eq.s32.totalorder %s208, 0
      %s211 = sadd.s32 %s210, 1
      %s212 = scalar_select %p209, %s210, %s211
      %p215 = pneg %p209
      %p216 = scmp.eq.s32.totalorder %s17, 3
      %p217 = por %p215, %p216
      %p218 = scmp.ne.s32.totalorder %s210, %s213
      %p219 = scmp.eq.s32.totalorder %s17, 0
      %p220 = por %p218, %p219
      %p221 = scmp.ne.s32.totalorder %s210, %s213
      %p222 = scmp.eq.s32.totalorder %s22, 3
      %p223 = por %p221, %p222
      %p224 = scmp.ne.s32.totalorder %s213, %s214
      %p225 = scmp.eq.s32.totalorder %s22, 0
      %p226 = por %p224, %p225
      %p227 = scmp.ne.s32.totalorder %s213, %s214
      %p228 = scmp.eq.s32.totalorder %s23, 3
      %p229 = por %p227, %p228
      %p231 = scmp.ne.s32.totalorder %s214, %s230
      %p232 = scmp.eq.s32.totalorder %s23, 0
      %p233 = por %p231, %p232
      %p234 = scmp.le.s32.totalorder 1, %s17
      %p235 = scmp.lt.s32.totalorder %s17, 5
      %p236 = pnand %p234, %p235
      %p237 = pneg %p236
      // Predicated region
      $region9: #{tpu_custom_call.1} parent=5 // pred_check
        _
      $region10: #{tpu_custom_call.1} parent=5 // pred_check_branch
        %239 = sbr.rel (%p236) target = $region12
      $region11: #{tpu_custom_call.1} parent=5 // pred_region
        %s240 = ssub.s32 %s17, 1
        // Predicated region
        $region13: #{tpu_custom_call.1} parent=11 // pred_check
          %p241 = pneg %p116
        $region14: #{tpu_custom_call.1} parent=11 // pred_check_branch
          %243 = sbr.rel (%p241) target = $region16
        $region15: #{tpu_custom_call.1} parent=11 // pred_region
          _
        $region16: #{tpu_custom_call.1} parent=11 // pred_fallthru
          _
        // Predicated region
        $region17: #{tpu_custom_call.1} parent=11 // pred_check
          %p244 = pneg %p137
        $region18: #{tpu_custom_call.1} parent=11 // pred_check_branch
          %246 = sbr.rel (%p244) target = $region20
        $region19: #{tpu_custom_call.1} parent=11 // pred_region
          _
        $region20: #{tpu_custom_call.1} parent=11 // pred_fallthru
          _
        // Predicated region
        $region21: #{tpu_custom_call.1} parent=11 // pred_check
          %p247 = pneg %p158
        $region22: #{tpu_custom_call.1} parent=11 // pred_check_branch
          %249 = sbr.rel (%p247) target = $region24
        $region23: #{tpu_custom_call.1} parent=11 // pred_region
          _
        $region24: #{tpu_custom_call.1} parent=11 // pred_fallthru
          _
        // Predicated region
        $region25: #{tpu_custom_call.1} parent=11 // pred_check
          %p250 = pneg %p179
        $region26: #{tpu_custom_call.1} parent=11 // pred_check_branch
          %252 = sbr.rel (%p250) target = $region28
        $region27: #{tpu_custom_call.1} parent=11 // pred_region
          _
        $region28: #{tpu_custom_call.1} parent=11 // pred_fallthru
          _
        // Predicated region
        $region29: #{tpu_custom_call.1} parent=11 // pred_check
          %p253 = pneg %p200
        $region30: #{tpu_custom_call.1} parent=11 // pred_check_branch
          %255 = sbr.rel (%p253) target = $region32
        $region31: #{tpu_custom_call.1} parent=11 // pred_region
          _
        $region32: #{tpu_custom_call.1} parent=11 // pred_fallthru
          _
      $region12: #{tpu_custom_call.1} parent=5 // pred_fallthru
        _
      %p256 = scmp.lt.s32.totalorder %s17, 4
      // Predicated region
      $region33: #{tpu_custom_call.1} parent=5 // pred_check
        %p257 = pneg %p256
      $region34: #{tpu_custom_call.1} parent=5 // pred_check_branch
        %259 = sbr.rel (%p257) target = $region36
      $region35: #{tpu_custom_call.1} parent=5 // pred_region
        // Predicated region
        $region37: #{tpu_custom_call.1} parent=35 // pred_check
          %p260 = pneg %p37
        $region38: #{tpu_custom_call.1} parent=35 // pred_check_branch
          %262 = sbr.rel (%p260) target = $region40
        $region39: #{tpu_custom_call.1} parent=35 // pred_region
          %s263 = smul.u32 5, %s17
          %p264 = scmp.lt.s32.totalorder %s263, 19
          %s265 = scalar_select %p264, %s263, 19
          %s266 = smul.addr %s265, 2
          %s267 = smul.addr %s266, 8
          %s268 = scalar_lea.vmem %s0, %s267
          %s269 = smul.u32 5, %s17
        $region40: #{tpu_custom_call.1} parent=35 // pred_fallthru
          _
        // Predicated region
        $region41: #{tpu_custom_call.1} parent=35 // pred_check
          %p270 = pneg %p63
        $region42: #{tpu_custom_call.1} parent=35 // pred_check_branch
          %272 = sbr.rel (%p270) target = $region44
        $region43: #{tpu_custom_call.1} parent=35 // pred_region
          %s273 = smul.u32 5, %s17
          %p274 = scmp.lt.s32.totalorder %s273, 19
          %s275 = scalar_select %p274, %s273, 19
          %s276 = smul.addr %s275, 2
          %s277 = scalar_lea.vmem %s1, %s276
          %s278 = smul.u32 5, %s17
        $region44: #{tpu_custom_call.1} parent=35 // pred_fallthru
          _
        // Predicated region
        $region45: #{tpu_custom_call.1} parent=35 // pred_check
          %p279 = pneg %p89
        $region46: #{tpu_custom_call.1} parent=35 // pred_check_branch
          %281 = sbr.rel (%p279) target = $region48
        $region47: #{tpu_custom_call.1} parent=35 // pred_region
          %s282 = smul.u32 5, %s17
          %p283 = scmp.lt.s32.totalorder %s282, 19
          %s284 = scalar_select %p283, %s282, 19
          %s285 = smul.addr %s284, 2
          %s286 = scalar_lea.vmem %s2, %s285
          %s287 = smul.u32 5, %s17
        $region48: #{tpu_custom_call.1} parent=35 // pred_fallthru
          _
      $region36: #{tpu_custom_call.1} parent=5 // pred_fallthru
        _
      %p288 = scmp.le.s32.totalorder 1, %s17
      %p289 = scmp.lt.s32.totalorder %s17, 5
      %p290 = pnand %p288, %p289
      %p291 = pneg %p290
      // Predicated region
      $region49: #{tpu_custom_call.1} parent=5 // pred_check
        _
      $region50: #{tpu_custom_call.1} parent=5 // pred_check_branch
        %293 = sbr.rel (%p290) target = $region52
      $region51: #{tpu_custom_call.1} parent=5 // pred_region
        %s294 = ssub.s32 %s17, 1
        %s295 = smul.u32 5, %s22
        %p296 = scmp.lt.s32.totalorder %s295, 19
        %s297 = scalar_select %p296, %s295, 19
        %s298 = smul.addr %s297, 2
        %s299 = smul.addr %s298, 8
        %s300 = scalar_lea.vmem %s0, %s299
        %p301 = pneg %p43
        %p302 = pneg %p40
        %s303 = smul.u32 5, %s22
        %p304 = scmp.lt.s32.totalorder %s303, 19
        %s305 = scalar_select %p304, %s303, 19
        %s306 = smul.addr %s305, 2
        %s307 = scalar_lea.vmem %s1, %s306
        %p308 = pneg %p69
        %p309 = pneg %p66
        %s310 = smul.u32 5, %s22
        %p311 = scmp.lt.s32.totalorder %s310, 19
        %s312 = scalar_select %p311, %s310, 19
        %s313 = smul.addr %s312, 2
        %s314 = scalar_lea.vmem %s2, %s313
        %p315 = pneg %p95
        %p316 = pneg %p92
        %p317 = pneg %p116
        %p318 = pneg %p113
        %p319 = pneg %p137
        %p320 = pneg %p134
        %p321 = pneg %p158
        %p322 = pneg %p155
        %p323 = pneg %p179
        %p324 = pneg %p176
        %p325 = pneg %p200
        %p326 = pneg %p197
        %p327 = pneg %p226
        %p328 = pneg %p223
        %s329 = sand.u32 %s213, 1
        %s330 = scalar_lea.sflag [#allocation3], %s329
        %s331 = sand.u32 %s213, 1
        %s332 = smul.addr %s331, 160
        %s333 = scalar_lea.vmem [#allocation2], %s332
        %s334 = smul.u32 5, %s22
        %p335 = scmp.lt.s32.totalorder %s334, 19
        %s336 = scalar_select %p335, %s334, 19
        %s337 = smul.addr %s336, 2
        %s338 = smul.addr %s337, 8
        %s339 = scalar_lea.vmem %s0, %s338
        %s340 = smul.u32 5, %s22
        %s341 = smul.u32 5, %s22
        %p342 = scmp.lt.s32.totalorder %s341, 19
        %s343 = scalar_select %p342, %s341, 19
        %s344 = smul.addr %s343, 2
        %s345 = scalar_lea.vmem %s1, %s344
        %s346 = smul.u32 5, %s22
        %s347 = smul.u32 5, %s22
        %p348 = scmp.lt.s32.totalorder %s347, 19
        %s349 = scalar_select %p348, %s347, 19
        %s350 = smul.addr %s349, 2
        %s351 = scalar_lea.vmem %s2, %s350
        %s352 = smul.u32 5, %s22
        %s353 = smul.u32 5, %s22
        %v354 = vld [vmem:[%s339] sm:$0xff]
        %v355 = vld [vmem:[%s339 + $0x8] sm:$0xff]
        %v356 = vld [vmem:[%s339 + $0x10] sm:$0xff]
        %v357 = vld [vmem:[%s339 + $0x18] sm:$0xff]
        %v358 = vld [vmem:[%s339 + $0x20] sm:$0xff]
        %v359 = vld [vmem:[%s339 + $0x28] sm:$0xff]
        %v360 = vld [vmem:[%s339 + $0x30] sm:$0xff]
        %v361 = vld [vmem:[%s339 + $0x38] sm:$0xff]
        %v362 = vld [vmem:[%s339 + $0x40] sm:$0xff]
        %v363 = vld [vmem:[%s339 + $0x48] sm:$0xff]
        %v364 = vld [vmem:[%s3] sm:$0xff]
        %v365 = vld [vmem:[%s3 + $0x8] sm:$0xff]
        %vm366 = vcmask 130048
        %v368 = vsel %vm366, %v354, 0
        %v371 = vsel %vm366, %v355, 0
        %v374 = vsel %vm366, %v356, 0
        %v377 = vsel %vm366, %v357, 0
        %v380 = vsel %vm366, %v358, 0
        %v383 = vsel %vm366, %v359, 0
        %v386 = vsel %vm366, %v360, 0
        %v389 = vsel %vm366, %v361, 0
        %v392 = vsel %vm366, %v362, 0
        %v395 = vsel %vm366, %v363, 0
        %397 = vmatpush.msra.mxu0 0.0
        %398 = vmatpush.msra.mxu0 0.0
        %399 = vmatpush.msra.mxu0 0.0
        %400 = vmatpush.msra.mxu0 0.0
        %401 = vmatpush.msra.mxu0 0.0
        %402 = vmatpush.msra.mxu0 0.0
        %403 = vmatpush.msra.mxu0 0.0
        %404 = vmatpush.msra.mxu0 0.0
        %405 = vmatpush.msra.mxu0 0.0
        %406 = vmatpush.msra.mxu0 0.0
        %407 = vmatpush.msra.mxu0 0.0
        %408 = vmatpush.msra.mxu0 0.0
        %409 = vmatpush.msra.mxu0 0.0
        %410 = vmatpush.msra.mxu0 0.0
        %v411 = vand.u32 %v365, 4294901760
        %412 = vmatpush.msra.mxu0 %v411
        %v413 = vand.u32 %v364, 4294901760
        %414 = vmatpush.msra.mxu0 %v413
        %v415 = vand.u32 %v368, 4294901760
        %v416 = vsub.f32 %v368, %v415
        %v417 = vand.u32 %v416, 4294901760
        %v418 = vsub.f32 %v416, %v417
        %v419 = vand.u32 %v418, 4294901760
        %420 = vmatmul.f32.gmra.mxu0 %v419
        %v421 = vpop.f32.mrf.mxu0
        %v422 = vadd.f32 0.0, %v421
        %v423 = vand.u32 %v371, 4294901760
        %v424 = vsub.f32 %v371, %v423
        %v425 = vand.u32 %v424, 4294901760
        %v426 = vsub.f32 %v424, %v425
        %v427 = vand.u32 %v426, 4294901760
        %428 = vmatmul.f32.gmra.mxu0 %v427
        %v429 = vpop.f32.mrf.mxu0
        %v430 = vadd.f32 0.0, %v429
        %v431 = vand.u32 %v374, 4294901760
        %v432 = vsub.f32 %v374, %v431
        %v433 = vand.u32 %v432, 4294901760
        %v434 = vsub.f32 %v432, %v433
        %v435 = vand.u32 %v434, 4294901760
        %436 = vmatmul.f32.gmra.mxu0 %v435
        %v437 = vpop.f32.mrf.mxu0
        %v438 = vadd.f32 0.0, %v437
        %v439 = vand.u32 %v377, 4294901760
        %v440 = vsub.f32 %v377, %v439
        %v441 = vand.u32 %v440, 4294901760
        %v442 = vsub.f32 %v440, %v441
        %v443 = vand.u32 %v442, 4294901760
        %444 = vmatmul.f32.gmra.mxu0 %v443
        %v445 = vpop.f32.mrf.mxu0
        %v446 = vadd.f32 0.0, %v445
        %v447 = vand.u32 %v380, 4294901760
        %v448 = vsub.f32 %v380, %v447
        %v449 = vand.u32 %v448, 4294901760
        %v450 = vsub.f32 %v448, %v449
        %v451 = vand.u32 %v450, 4294901760
        %452 = vmatmul.f32.gmra.mxu0 %v451
        %v453 = vpop.f32.mrf.mxu0
        %v454 = vadd.f32 0.0, %v453
        %v455 = vand.u32 %v383, 4294901760
        %v456 = vsub.f32 %v383, %v455
        %v457 = vand.u32 %v456, 4294901760
        %v458 = vsub.f32 %v456, %v457
        %v459 = vand.u32 %v458, 4294901760
        %460 = vmatmul.f32.gmra.mxu0 %v459
        %v461 = vpop.f32.mrf.mxu0
        %v462 = vadd.f32 0.0, %v461
        %v463 = vand.u32 %v386, 4294901760
        %v464 = vsub.f32 %v386, %v463
        %v465 = vand.u32 %v464, 4294901760
        %v466 = vsub.f32 %v464, %v465
        %v467 = vand.u32 %v466, 4294901760
        %468 = vmatmul.f32.gmra.mxu0 %v467
        %v469 = vpop.f32.mrf.mxu0
        %v470 = vadd.f32 0.0, %v469
        %v471 = vand.u32 %v389, 4294901760
        %v472 = vsub.f32 %v389, %v471
        %v473 = vand.u32 %v472, 4294901760
        %v474 = vsub.f32 %v472, %v473
        %v475 = vand.u32 %v474, 4294901760
        %476 = vmatmul.f32.gmra.mxu0 %v475
        %v477 = vpop.f32.mrf.mxu0
        %v478 = vadd.f32 0.0, %v477
        %v479 = vand.u32 %v392, 4294901760
        %v480 = vsub.f32 %v392, %v479
        %v481 = vand.u32 %v480, 4294901760
        %v482 = vsub.f32 %v480, %v481
        %v483 = vand.u32 %v482, 4294901760
        %484 = vmatmul.f32.gmra.mxu0 %v483
        %v485 = vpop.f32.mrf.mxu0
        %v486 = vadd.f32 0.0, %v485
        %v487 = vand.u32 %v395, 4294901760
        %v488 = vsub.f32 %v395, %v487
        %v489 = vand.u32 %v488, 4294901760
        %v490 = vsub.f32 %v488, %v489
        %v491 = vand.u32 %v490, 4294901760
        %492 = vmatmul.f32.gmra.mxu0 %v491
        %v493 = vpop.f32.mrf.mxu0
        %v494 = vadd.f32 0.0, %v493
        %495 = vdwg.mxu0
        %496 = vmatpush.msra.mxu0 0.0
        %497 = vmatpush.msra.mxu0 0.0
        %498 = vmatpush.msra.mxu0 0.0
        %499 = vmatpush.msra.mxu0 0.0
        %500 = vmatpush.msra.mxu0 0.0
        %501 = vmatpush.msra.mxu0 0.0
        %502 = vmatpush.msra.mxu0 0.0
        %503 = vmatpush.msra.mxu0 0.0
        %504 = vmatpush.msra.mxu0 0.0
        %505 = vmatpush.msra.mxu0 0.0
        %506 = vmatpush.msra.mxu0 0.0
        %507 = vmatpush.msra.mxu0 0.0
        %508 = vmatpush.msra.mxu0 0.0
        %509 = vmatpush.msra.mxu0 0.0
        %v510 = vand.u32 %v365, 4294901760
        %v511 = vsub.f32 %v365, %v510
        %v512 = vand.u32 %v511, 4294901760
        %v513 = vsub.f32 %v511, %v512
        %v514 = vand.u32 %v513, 4294901760
        %515 = vmatpush.msra.mxu0 %v514
        %v516 = vand.u32 %v364, 4294901760
        %v517 = vsub.f32 %v364, %v516
        %v518 = vand.u32 %v517, 4294901760
        %v519 = vsub.f32 %v517, %v518
        %v520 = vand.u32 %v519, 4294901760
        %521 = vmatpush.msra.mxu0 %v520
        %v522 = vand.u32 %v368, 4294901760
        %523 = vmatmul.f32.gmra.mxu0 %v522
        %v524 = vpop.f32.mrf.mxu0
        %v525 = vadd.f32 %v422, %v524
        %v526 = vand.u32 %v371, 4294901760
        %527 = vmatmul.f32.gmra.mxu0 %v526
        %v528 = vpop.f32.mrf.mxu0
        %v529 = vadd.f32 %v430, %v528
        %v530 = vand.u32 %v374, 4294901760
        %531 = vmatmul.f32.gmra.mxu0 %v530
        %v532 = vpop.f32.mrf.mxu0
        %v533 = vadd.f32 %v438, %v532
        %v534 = vand.u32 %v377, 4294901760
        %535 = vmatmul.f32.gmra.mxu0 %v534
        %v536 = vpop.f32.mrf.mxu0
        %v537 = vadd.f32 %v446, %v536
        %v538 = vand.u32 %v380, 4294901760
        %539 = vmatmul.f32.gmra.mxu0 %v538
        %v540 = vpop.f32.mrf.mxu0
        %v541 = vadd.f32 %v454, %v540
        %v542 = vand.u32 %v383, 4294901760
        %543 = vmatmul.f32.gmra.mxu0 %v542
        %v544 = vpop.f32.mrf.mxu0
        %v545 = vadd.f32 %v462, %v544
        %v546 = vand.u32 %v386, 4294901760
        %547 = vmatmul.f32.gmra.mxu0 %v546
        %v548 = vpop.f32.mrf.mxu0
        %v549 = vadd.f32 %v470, %v548
        %v550 = vand.u32 %v389, 4294901760
        %551 = vmatmul.f32.gmra.mxu0 %v550
        %v552 = vpop.f32.mrf.mxu0
        %v553 = vadd.f32 %v478, %v552
        %v554 = vand.u32 %v392, 4294901760
        %555 = vmatmul.f32.gmra.mxu0 %v554
        %v556 = vpop.f32.mrf.mxu0
        %v557 = vadd.f32 %v486, %v556
        %v558 = vand.u32 %v395, 4294901760
        %559 = vmatmul.f32.gmra.mxu0 %v558
        %v560 = vpop.f32.mrf.mxu0
        %v561 = vadd.f32 %v494, %v560
        %562 = vdwg.mxu0
        %563 = vmatpush.msra.mxu0 0.0
        %564 = vmatpush.msra.mxu0 0.0
        %565 = vmatpush.msra.mxu0 0.0
        %566 = vmatpush.msra.mxu0 0.0
        %567 = vmatpush.msra.mxu0 0.0
        %568 = vmatpush.msra.mxu0 0.0
        %569 = vmatpush.msra.mxu0 0.0
        %570 = vmatpush.msra.mxu0 0.0
        %571 = vmatpush.msra.mxu0 0.0
        %572 = vmatpush.msra.mxu0 0.0
        %573 = vmatpush.msra.mxu0 0.0
        %574 = vmatpush.msra.mxu0 0.0
        %575 = vmatpush.msra.mxu0 0.0
        %576 = vmatpush.msra.mxu0 0.0
        %v577 = vand.u32 %v365, 4294901760
        %v578 = vsub.f32 %v365, %v577
        %579 = vmatpush.msra.mxu0 %v578
        %v580 = vand.u32 %v364, 4294901760
        %v581 = vsub.f32 %v364, %v580
        %582 = vmatpush.msra.mxu0 %v581
        %v583 = vand.u32 %v368, 4294901760
        %v584 = vsub.f32 %v368, %v583
        %585 = vmatmul.f32.gmra.mxu0 %v584
        %v586 = vpop.f32.mrf.mxu0
        %v587 = vadd.f32 %v525, %v586
        %v588 = vand.u32 %v371, 4294901760
        %v589 = vsub.f32 %v371, %v588
        %590 = vmatmul.f32.gmra.mxu0 %v589
        %v591 = vpop.f32.mrf.mxu0
        %v592 = vadd.f32 %v529, %v591
        %v593 = vand.u32 %v374, 4294901760
        %v594 = vsub.f32 %v374, %v593
        %595 = vmatmul.f32.gmra.mxu0 %v594
        %v596 = vpop.f32.mrf.mxu0
        %v597 = vadd.f32 %v533, %v596
        %v598 = vand.u32 %v377, 4294901760
        %v599 = vsub.f32 %v377, %v598
        %600 = vmatmul.f32.gmra.mxu0 %v599
        %v601 = vpop.f32.mrf.mxu0
        %v602 = vadd.f32 %v537, %v601
        %v603 = vand.u32 %v380, 4294901760
        %v604 = vsub.f32 %v380, %v603
        %605 = vmatmul.f32.gmra.mxu0 %v604
        %v606 = vpop.f32.mrf.mxu0
        %v607 = vadd.f32 %v541, %v606
        %v608 = vand.u32 %v383, 4294901760
        %v609 = vsub.f32 %v383, %v608
        %610 = vmatmul.f32.gmra.mxu0 %v609
        %v611 = vpop.f32.mrf.mxu0
        %v612 = vadd.f32 %v545, %v611
        %v613 = vand.u32 %v386, 4294901760
        %v614 = vsub.f32 %v386, %v613
        %615 = vmatmul.f32.gmra.mxu0 %v614
        %v616 = vpop.f32.mrf.mxu0
        %v617 = vadd.f32 %v549, %v616
        %v618 = vand.u32 %v389, 4294901760
        %v619 = vsub.f32 %v389, %v618
        %620 = vmatmul.f32.gmra.mxu0 %v619
        %v621 = vpop.f32.mrf.mxu0
        %v622 = vadd.f32 %v553, %v621
        %v623 = vand.u32 %v392, 4294901760
        %v624 = vsub.f32 %v392, %v623
        %625 = vmatmul.f32.gmra.mxu0 %v624
        %v626 = vpop.f32.mrf.mxu0
        %v627 = vadd.f32 %v557, %v626
        %v628 = vand.u32 %v395, 4294901760
        %v629 = vsub.f32 %v395, %v628
        %630 = vmatmul.f32.gmra.mxu0 %v629
        %v631 = vpop.f32.mrf.mxu0
        %v632 = vadd.f32 %v561, %v631
        %633 = vdwg.mxu0
        %634 = vmatpush.msra.mxu0 0.0
        %635 = vmatpush.msra.mxu0 0.0
        %636 = vmatpush.msra.mxu0 0.0
        %637 = vmatpush.msra.mxu0 0.0
        %638 = vmatpush.msra.mxu0 0.0
        %639 = vmatpush.msra.mxu0 0.0
        %640 = vmatpush.msra.mxu0 0.0
        %641 = vmatpush.msra.mxu0 0.0
        %642 = vmatpush.msra.mxu0 0.0
        %643 = vmatpush.msra.mxu0 0.0
        %644 = vmatpush.msra.mxu0 0.0
        %645 = vmatpush.msra.mxu0 0.0
        %646 = vmatpush.msra.mxu0 0.0
        %647 = vmatpush.msra.mxu0 0.0
        %v648 = vand.u32 %v365, 4294901760
        %649 = vmatpush.msra.mxu0 %v648
        %v650 = vand.u32 %v364, 4294901760
        %651 = vmatpush.msra.mxu0 %v650
        %v652 = vand.u32 %v368, 4294901760
        %v653 = vsub.f32 %v368, %v652
        %v654 = vand.u32 %v653, 4294901760
        %655 = vmatmul.f32.gmra.mxu0 %v654
        %v656 = vpop.f32.mrf.mxu0
        %v657 = vadd.f32 %v587, %v656
        %v658 = vand.u32 %v371, 4294901760
        %v659 = vsub.f32 %v371, %v658
        %v660 = vand.u32 %v659, 4294901760
        %661 = vmatmul.f32.gmra.mxu0 %v660
        %v662 = vpop.f32.mrf.mxu0
        %v663 = vadd.f32 %v592, %v662
        %v664 = vand.u32 %v374, 4294901760
        %v665 = vsub.f32 %v374, %v664
        %v666 = vand.u32 %v665, 4294901760
        %667 = vmatmul.f32.gmra.mxu0 %v666
        %v668 = vpop.f32.mrf.mxu0
        %v669 = vadd.f32 %v597, %v668
        %v670 = vand.u32 %v377, 4294901760
        %v671 = vsub.f32 %v377, %v670
        %v672 = vand.u32 %v671, 4294901760
        %673 = vmatmul.f32.gmra.mxu0 %v672
        %v674 = vpop.f32.mrf.mxu0
        %v675 = vadd.f32 %v602, %v674
        %v676 = vand.u32 %v380, 4294901760
        %v677 = vsub.f32 %v380, %v676
        %v678 = vand.u32 %v677, 4294901760
        %679 = vmatmul.f32.gmra.mxu0 %v678
        %v680 = vpop.f32.mrf.mxu0
        %v681 = vadd.f32 %v607, %v680
        %v682 = vand.u32 %v383, 4294901760
        %v683 = vsub.f32 %v383, %v682
        %v684 = vand.u32 %v683, 4294901760
        %685 = vmatmul.f32.gmra.mxu0 %v684
        %v686 = vpop.f32.mrf.mxu0
        %v687 = vadd.f32 %v612, %v686
        %v688 = vand.u32 %v386, 4294901760
        %v689 = vsub.f32 %v386, %v688
        %v690 = vand.u32 %v689, 4294901760
        %691 = vmatmul.f32.gmra.mxu0 %v690
        %v692 = vpop.f32.mrf.mxu0
        %v693 = vadd.f32 %v617, %v692
        %v694 = vand.u32 %v389, 4294901760
        %v695 = vsub.f32 %v389, %v694
        %v696 = vand.u32 %v695, 4294901760
        %697 = vmatmul.f32.gmra.mxu0 %v696
        %v698 = vpop.f32.mrf.mxu0
        %v699 = vadd.f32 %v622, %v698
        %v700 = vand.u32 %v392, 4294901760
        %v701 = vsub.f32 %v392, %v700
        %v702 = vand.u32 %v701, 4294901760
        %703 = vmatmul.f32.gmra.mxu0 %v702
        %v704 = vpop.f32.mrf.mxu0
        %v705 = vadd.f32 %v627, %v704
        %v706 = vand.u32 %v395, 4294901760
        %v707 = vsub.f32 %v395, %v706
        %v708 = vand.u32 %v707, 4294901760
        %709 = vmatmul.f32.gmra.mxu0 %v708
        %v710 = vpop.f32.mrf.mxu0
        %v711 = vadd.f32 %v632, %v710
        %712 = vdwg.mxu0
        %713 = vmatpush.msra.mxu0 0.0
        %714 = vmatpush.msra.mxu0 0.0
        %715 = vmatpush.msra.mxu0 0.0
        %716 = vmatpush.msra.mxu0 0.0
        %717 = vmatpush.msra.mxu0 0.0
        %718 = vmatpush.msra.mxu0 0.0
        %719 = vmatpush.msra.mxu0 0.0
        %720 = vmatpush.msra.mxu0 0.0
        %721 = vmatpush.msra.mxu0 0.0
        %722 = vmatpush.msra.mxu0 0.0
        %723 = vmatpush.msra.mxu0 0.0
        %724 = vmatpush.msra.mxu0 0.0
        %725 = vmatpush.msra.mxu0 0.0
        %726 = vmatpush.msra.mxu0 0.0
        %v727 = vand.u32 %v365, 4294901760
        %v728 = vsub.f32 %v365, %v727
        %v729 = vand.u32 %v728, 4294901760
        %730 = vmatpush.msra.mxu0 %v729
        %v731 = vand.u32 %v364, 4294901760
        %v732 = vsub.f32 %v364, %v731
        %v733 = vand.u32 %v732, 4294901760
        %734 = vmatpush.msra.mxu0 %v733
        %v735 = vand.u32 %v368, 4294901760
        %736 = vmatmul.f32.gmra.mxu0 %v735
        %v737 = vpop.f32.mrf.mxu0
        %v738 = vadd.f32 %v657, %v737
        %v739 = vand.u32 %v371, 4294901760
        %740 = vmatmul.f32.gmra.mxu0 %v739
        %v741 = vpop.f32.mrf.mxu0
        %v742 = vadd.f32 %v663, %v741
        %v743 = vand.u32 %v374, 4294901760
        %744 = vmatmul.f32.gmra.mxu0 %v743
        %v745 = vpop.f32.mrf.mxu0
        %v746 = vadd.f32 %v669, %v745
        %v747 = vand.u32 %v377, 4294901760
        %748 = vmatmul.f32.gmra.mxu0 %v747
        %v749 = vpop.f32.mrf.mxu0
        %v750 = vadd.f32 %v675, %v749
        %v751 = vand.u32 %v380, 4294901760
        %752 = vmatmul.f32.gmra.mxu0 %v751
        %v753 = vpop.f32.mrf.mxu0
        %v754 = vadd.f32 %v681, %v753
        %v755 = vand.u32 %v383, 4294901760
        %756 = vmatmul.f32.gmra.mxu0 %v755
        %v757 = vpop.f32.mrf.mxu0
        %v758 = vadd.f32 %v687, %v757
        %v759 = vand.u32 %v386, 4294901760
        %760 = vmatmul.f32.gmra.mxu0 %v759
        %v761 = vpop.f32.mrf.mxu0
        %v762 = vadd.f32 %v693, %v761
        %v763 = vand.u32 %v389, 4294901760
        %764 = vmatmul.f32.gmra.mxu0 %v763
        %v765 = vpop.f32.mrf.mxu0
        %v766 = vadd.f32 %v699, %v765
        %v767 = vand.u32 %v392, 4294901760
        %768 = vmatmul.f32.gmra.mxu0 %v767
        %v769 = vpop.f32.mrf.mxu0
        %v770 = vadd.f32 %v705, %v769
        %v771 = vand.u32 %v395, 4294901760
        %772 = vmatmul.f32.gmra.mxu0 %v771
        %v773 = vpop.f32.mrf.mxu0
        %v774 = vadd.f32 %v711, %v773
        %775 = vdwg.mxu0
        %776 = vmatpush.msra.mxu0 0.0
        %777 = vmatpush.msra.mxu0 0.0
        %778 = vmatpush.msra.mxu0 0.0
        %779 = vmatpush.msra.mxu0 0.0
        %780 = vmatpush.msra.mxu0 0.0
        %781 = vmatpush.msra.mxu0 0.0
        %782 = vmatpush.msra.mxu0 0.0
        %783 = vmatpush.msra.mxu0 0.0
        %784 = vmatpush.msra.mxu0 0.0
        %785 = vmatpush.msra.mxu0 0.0
        %786 = vmatpush.msra.mxu0 0.0
        %787 = vmatpush.msra.mxu0 0.0
        %788 = vmatpush.msra.mxu0 0.0
        %789 = vmatpush.msra.mxu0 0.0
        %v790 = vand.u32 %v365, 4294901760
        %791 = vmatpush.msra.mxu0 %v790
        %v792 = vand.u32 %v364, 4294901760
        %793 = vmatpush.msra.mxu0 %v792
        %v794 = vand.u32 %v368, 4294901760
        %795 = vmatmul.f32.gmra.mxu0 %v794
        %v796 = vpop.f32.mrf.mxu0
        %v797 = vadd.f32 %v738, %v796
        %v798 = vand.u32 %v371, 4294901760
        %799 = vmatmul.f32.gmra.mxu0 %v798
        %v800 = vpop.f32.mrf.mxu0
        %v801 = vadd.f32 %v742, %v800
        %v802 = vand.u32 %v374, 4294901760
        %803 = vmatmul.f32.gmra.mxu0 %v802
        %v804 = vpop.f32.mrf.mxu0
        %v805 = vadd.f32 %v746, %v804
        %v806 = vand.u32 %v377, 4294901760
        %807 = vmatmul.f32.gmra.mxu0 %v806
        %v808 = vpop.f32.mrf.mxu0
        %v809 = vadd.f32 %v750, %v808
        %v810 = vand.u32 %v380, 4294901760
        %811 = vmatmul.f32.gmra.mxu0 %v810
        %v812 = vpop.f32.mrf.mxu0
        %v813 = vadd.f32 %v754, %v812
        %v814 = vand.u32 %v383, 4294901760
        %815 = vmatmul.f32.gmra.mxu0 %v814
        %v816 = vpop.f32.mrf.mxu0
        %v817 = vadd.f32 %v758, %v816
        %v818 = vand.u32 %v386, 4294901760
        %819 = vmatmul.f32.gmra.mxu0 %v818
        %v820 = vpop.f32.mrf.mxu0
        %v821 = vadd.f32 %v762, %v820
        %v822 = vand.u32 %v389, 4294901760
        %823 = vmatmul.f32.gmra.mxu0 %v822
        %v824 = vpop.f32.mrf.mxu0
        %v825 = vadd.f32 %v766, %v824
        %v826 = vand.u32 %v392, 4294901760
        %827 = vmatmul.f32.gmra.mxu0 %v826
        %v828 = vpop.f32.mrf.mxu0
        %v829 = vadd.f32 %v770, %v828
        %v830 = vand.u32 %v395, 4294901760
        %831 = vmatmul.f32.gmra.mxu0 %v830
        %v832 = vpop.f32.mrf.mxu0
        %v833 = vadd.f32 %v774, %v832
        %834 = vdwg.mxu0
        %v835 = vld [vmem:[%s351] sm:$0x3]
        %v836 = vld [vmem:[%s351 + $0x2] sm:$0x3]
        %v837 = vld [vmem:[%s351 + $0x4] sm:$0x3]
        %v838 = vld [vmem:[%s351 + $0x6] sm:$0x3]
        %v839 = vld [vmem:[%s351 + $0x8] sm:$0x3]
        %v840 = vld [vmem:[%s5] sm:$0x3]
        %v841 = vperm.slane %v835, 0
        %v842 = vlaneseq
        %v843 = vshrl.u32 %v842, 7
        %845 = vset.pattern.permute.xlu0 %v843
        %846 = vperm.xlu0 %845, %v841
        %v847 = vpop.permute.xlu0 %846
        %v848 = vlaneseq
        %v849 = vshrl.u32 %v848, 7
        %v850 = vadd.s32 %v849, 8
        %851 = vset.pattern.permute.xlu0 %v850
        %852 = vperm.xlu0 %851, %v841
        %v853 = vpop.permute.xlu0 %852
        %v854 = vperm.slane %v836, 0
        %v855 = vlaneseq
        %v856 = vshrl.u32 %v855, 7
        %858 = vset.pattern.permute.xlu0 %v856
        %859 = vperm.xlu0 %858, %v854
        %v860 = vpop.permute.xlu0 %859
        %v861 = vlaneseq
        %v862 = vshrl.u32 %v861, 7
        %v863 = vadd.s32 %v862, 8
        %864 = vset.pattern.permute.xlu0 %v863
        %865 = vperm.xlu0 %864, %v854
        %v866 = vpop.permute.xlu0 %865
        %v867 = vperm.slane %v837, 0
        %v868 = vlaneseq
        %v869 = vshrl.u32 %v868, 7
        %871 = vset.pattern.permute.xlu0 %v869
        %872 = vperm.xlu0 %871, %v867
        %v873 = vpop.permute.xlu0 %872
        %v874 = vlaneseq
        %v875 = vshrl.u32 %v874, 7
        %v876 = vadd.s32 %v875, 8
        %877 = vset.pattern.permute.xlu0 %v876
        %878 = vperm.xlu0 %877, %v867
        %v879 = vpop.permute.xlu0 %878
        %v880 = vperm.slane %v838, 0
        %v881 = vlaneseq
        %v882 = vshrl.u32 %v881, 7
        %884 = vset.pattern.permute.xlu0 %v882
        %885 = vperm.xlu0 %884, %v880
        %v886 = vpop.permute.xlu0 %885
        %v887 = vlaneseq
        %v888 = vshrl.u32 %v887, 7
        %v889 = vadd.s32 %v888, 8
        %890 = vset.pattern.permute.xlu0 %v889
        %891 = vperm.xlu0 %890, %v880
        %v892 = vpop.permute.xlu0 %891
        %v893 = vperm.slane %v839, 0
        %v894 = vlaneseq
        %v895 = vshrl.u32 %v894, 7
        %897 = vset.pattern.permute.xlu0 %v895
        %898 = vperm.xlu0 %897, %v893
        %v899 = vpop.permute.xlu0 %898
        %v900 = vlaneseq
        %v901 = vshrl.u32 %v900, 7
        %v902 = vadd.s32 %v901, 8
        %903 = vset.pattern.permute.xlu0 %v902
        %904 = vperm.xlu0 %903, %v893
        %v905 = vpop.permute.xlu0 %904
        %v906 = vperm.slane %v840, 0
        %v907 = vmul.f32 %v847, %v906
        %v908 = vmul.f32 %v853, %v906
        %v909 = vmul.f32 %v860, %v906
        %v910 = vmul.f32 %v866, %v906
        %v911 = vmul.f32 %v873, %v906
        %v912 = vmul.f32 %v879, %v906
        %v913 = vmul.f32 %v886, %v906
        %v914 = vmul.f32 %v892, %v906
        %v915 = vmul.f32 %v899, %v906
        %v916 = vmul.f32 %v905, %v906
        %v917 = vadd.f32 %v797, %v907
        %v918 = vadd.f32 %v801, %v908
        %v919 = vadd.f32 %v805, %v909
        %v920 = vadd.f32 %v809, %v910
        %v921 = vadd.f32 %v813, %v911
        %v922 = vadd.f32 %v817, %v912
        %v923 = vadd.f32 %v821, %v913
        %v924 = vadd.f32 %v825, %v914
        %v925 = vadd.f32 %v829, %v915
        %v926 = vadd.f32 %v833, %v916
        %v927 = vperm.slane %v835, 1
        %v928 = vlaneseq
        %v929 = vshrl.u32 %v928, 7
        %931 = vset.pattern.permute.xlu0 %v929
        %932 = vperm.xlu0 %931, %v927
        %v933 = vpop.permute.xlu0 %932
        %v934 = vlaneseq
        %v935 = vshrl.u32 %v934, 7
        %v936 = vadd.s32 %v935, 8
        %937 = vset.pattern.permute.xlu0 %v936
        %938 = vperm.xlu0 %937, %v927
        %v939 = vpop.permute.xlu0 %938
        %v940 = vperm.slane %v836, 1
        %v941 = vlaneseq
        %v942 = vshrl.u32 %v941, 7
        %944 = vset.pattern.permute.xlu0 %v942
        %945 = vperm.xlu0 %944, %v940
        %v946 = vpop.permute.xlu0 %945
        %v947 = vlaneseq
        %v948 = vshrl.u32 %v947, 7
        %v949 = vadd.s32 %v948, 8
        %950 = vset.pattern.permute.xlu0 %v949
        %951 = vperm.xlu0 %950, %v940
        %v952 = vpop.permute.xlu0 %951
        %v953 = vperm.slane %v837, 1
        %v954 = vlaneseq
        %v955 = vshrl.u32 %v954, 7
        %957 = vset.pattern.permute.xlu0 %v955
        %958 = vperm.xlu0 %957, %v953
        %v959 = vpop.permute.xlu0 %958
        %v960 = vlaneseq
        %v961 = vshrl.u32 %v960, 7
        %v962 = vadd.s32 %v961, 8
        %963 = vset.pattern.permute.xlu0 %v962
        %964 = vperm.xlu0 %963, %v953
        %v965 = vpop.permute.xlu0 %964
        %v966 = vperm.slane %v838, 1
        %v967 = vlaneseq
        %v968 = vshrl.u32 %v967, 7
        %970 = vset.pattern.permute.xlu0 %v968
        %971 = vperm.xlu0 %970, %v966
        %v972 = vpop.permute.xlu0 %971
        %v973 = vlaneseq
        %v974 = vshrl.u32 %v973, 7
        %v975 = vadd.s32 %v974, 8
        %976 = vset.pattern.permute.xlu0 %v975
        %977 = vperm.xlu0 %976, %v966
        %v978 = vpop.permute.xlu0 %977
        %v979 = vperm.slane %v839, 1
        %v980 = vlaneseq
        %v981 = vshrl.u32 %v980, 7
        %983 = vset.pattern.permute.xlu0 %v981
        %984 = vperm.xlu0 %983, %v979
        %v985 = vpop.permute.xlu0 %984
        %v986 = vlaneseq
        %v987 = vshrl.u32 %v986, 7
        %v988 = vadd.s32 %v987, 8
        %989 = vset.pattern.permute.xlu0 %v988
        %990 = vperm.xlu0 %989, %v979
        %v991 = vpop.permute.xlu0 %990
        %v992 = vperm.slane %v840, 1
        %v993 = vmul.f32 %v933, %v992
        %v994 = vmul.f32 %v939, %v992
        %v995 = vmul.f32 %v946, %v992
        %v996 = vmul.f32 %v952, %v992
        %v997 = vmul.f32 %v959, %v992
        %v998 = vmul.f32 %v965, %v992
        %v999 = vmul.f32 %v972, %v992
        %v1000 = vmul.f32 %v978, %v992
        %v1001 = vmul.f32 %v985, %v992
        %v1002 = vmul.f32 %v991, %v992
        %v1003 = vadd.f32 %v917, %v993
        %v1004 = vadd.f32 %v918, %v994
        %v1005 = vadd.f32 %v919, %v995
        %v1006 = vadd.f32 %v920, %v996
        %v1007 = vadd.f32 %v921, %v997
        %v1008 = vadd.f32 %v922, %v998
        %v1009 = vadd.f32 %v923, %v999
        %v1010 = vadd.f32 %v924, %v1000
        %v1011 = vadd.f32 %v925, %v1001
        %v1012 = vadd.f32 %v926, %v1002
        %v1013 = vld [vmem:[%s345] sm:$0x3]
        %v1014 = vld [vmem:[%s345 + $0x2] sm:$0x3]
        %v1015 = vld [vmem:[%s345 + $0x4] sm:$0x3]
        %v1016 = vld [vmem:[%s345 + $0x6] sm:$0x3]
        %v1017 = vld [vmem:[%s345 + $0x8] sm:$0x3]
        %v1018 = vld [vmem:[%s4] sm:$0xff]
        %v1019 = vld [vmem:[%s4 + $0x8] sm:$0xff]
        %v1020 = vld [vmem:[%s4 + $0x10] sm:$0x3]
        %v1026 = vrot.slane %v1014, 7
        %vm1027 = vcmask 1041409
        %v1028 = vsel %vm1027, %v1026, %v1013
        %v1029 = vrot.slane %v1015, 6
        %vm1030 = vcmask 1042434
        %v1031 = vsel %vm1030, %v1029, %v1028
        %v1032 = vrot.slane %v1016, 5
        %vm1033 = vcmask 1043459
        %v1034 = vsel %vm1033, %v1032, %v1031
        %v1035 = vrot.slane %v1017, 4
        %vm1036 = vcmask 1044484
        %v1037 = vsel %vm1036, %v1035, %v1034
        %vm1038 = vcmask 146432
        %v1039 = vsel %vm1038, %v1037, 0
        %vm1041 = vcmask 1041408
        %v1043 = vsel %vm1041, %v1020, 0
        %1045 = vmatpush.msra.mxu0 0.0
        %1046 = vmatpush.msra.mxu0 0.0
        %1047 = vmatpush.msra.mxu0 0.0
        %1048 = vmatpush.msra.mxu0 0.0
        %1049 = vmatpush.msra.mxu0 0.0
        %1050 = vmatpush.msra.mxu0 0.0
        %1051 = vmatpush.msra.mxu0 0.0
        %1052 = vmatpush.msra.mxu0 0.0
        %1053 = vmatpush.msra.mxu0 0.0
        %1054 = vmatpush.msra.mxu0 0.0
        %1055 = vmatpush.msra.mxu0 0.0
        %1056 = vmatpush.msra.mxu0 0.0
        %1057 = vmatpush.msra.mxu0 0.0
        %v1058 = vand.u32 %v1043, 4294901760
        %1059 = vmatpush.msra.mxu0 %v1058
        %v1060 = vand.u32 %v1019, 4294901760
        %1061 = vmatpush.msra.mxu0 %v1060
        %v1062 = vand.u32 %v1018, 4294901760
        %1063 = vmatpush.msra.mxu0 %v1062
        %v1064 = vand.u32 %v1039, 4294901760
        %v1065 = vsub.f32 %v1039, %v1064
        %v1066 = vand.u32 %v1065, 4294901760
        %v1067 = vsub.f32 %v1065, %v1066
        %v1068 = vand.u32 %v1067, 4294901760
        %1069 = vmatmul.f32.gmra.mxu0 %v1068
        %v1070 = vpop.f32.mrf.mxu0
        %v1071 = vadd.f32 0.0, %v1070
        %1072 = vdwg.mxu0
        %1073 = vmatpush.msra.mxu0 0.0
        %1074 = vmatpush.msra.mxu0 0.0
        %1075 = vmatpush.msra.mxu0 0.0
        %1076 = vmatpush.msra.mxu0 0.0
        %1077 = vmatpush.msra.mxu0 0.0
        %1078 = vmatpush.msra.mxu0 0.0
        %1079 = vmatpush.msra.mxu0 0.0
        %1080 = vmatpush.msra.mxu0 0.0
        %1081 = vmatpush.msra.mxu0 0.0
        %1082 = vmatpush.msra.mxu0 0.0
        %1083 = vmatpush.msra.mxu0 0.0
        %1084 = vmatpush.msra.mxu0 0.0
        %1085 = vmatpush.msra.mxu0 0.0
        %v1086 = vand.u32 %v1043, 4294901760
        %v1087 = vsub.f32 %v1043, %v1086
        %v1088 = vand.u32 %v1087, 4294901760
        %v1089 = vsub.f32 %v1087, %v1088
        %v1090 = vand.u32 %v1089, 4294901760
        %1091 = vmatpush.msra.mxu0 %v1090
        %v1092 = vand.u32 %v1019, 4294901760
        %v1093 = vsub.f32 %v1019, %v1092
        %v1094 = vand.u32 %v1093, 4294901760
        %v1095 = vsub.f32 %v1093, %v1094
        %v1096 = vand.u32 %v1095, 4294901760
        %1097 = vmatpush.msra.mxu0 %v1096
        %v1098 = vand.u32 %v1018, 4294901760
        %v1099 = vsub.f32 %v1018, %v1098
        %v1100 = vand.u32 %v1099, 4294901760
        %v1101 = vsub.f32 %v1099, %v1100
        %v1102 = vand.u32 %v1101, 4294901760
        %1103 = vmatpush.msra.mxu0 %v1102
        %v1104 = vand.u32 %v1039, 4294901760
        %1105 = vmatmul.f32.gmra.mxu0 %v1104
        %v1106 = vpop.f32.mrf.mxu0
        %v1107 = vadd.f32 %v1071, %v1106
        %1108 = vdwg.mxu0
        %1109 = vmatpush.msra.mxu0 0.0
        %1110 = vmatpush.msra.mxu0 0.0
        %1111 = vmatpush.msra.mxu0 0.0
        %1112 = vmatpush.msra.mxu0 0.0
        %1113 = vmatpush.msra.mxu0 0.0
        %1114 = vmatpush.msra.mxu0 0.0
        %1115 = vmatpush.msra.mxu0 0.0
        %1116 = vmatpush.msra.mxu0 0.0
        %1117 = vmatpush.msra.mxu0 0.0
        %1118 = vmatpush.msra.mxu0 0.0
        %1119 = vmatpush.msra.mxu0 0.0
        %1120 = vmatpush.msra.mxu0 0.0
        %1121 = vmatpush.msra.mxu0 0.0
        %v1122 = vand.u32 %v1043, 4294901760
        %v1123 = vsub.f32 %v1043, %v1122
        %1124 = vmatpush.msra.mxu0 %v1123
        %v1125 = vand.u32 %v1019, 4294901760
        %v1126 = vsub.f32 %v1019, %v1125
        %1127 = vmatpush.msra.mxu0 %v1126
        %v1128 = vand.u32 %v1018, 4294901760
        %v1129 = vsub.f32 %v1018, %v1128
        %1130 = vmatpush.msra.mxu0 %v1129
        %v1131 = vand.u32 %v1039, 4294901760
        %v1132 = vsub.f32 %v1039, %v1131
        %1133 = vmatmul.f32.gmra.mxu0 %v1132
        %v1134 = vpop.f32.mrf.mxu0
        %v1135 = vadd.f32 %v1107, %v1134
        %1136 = vdwg.mxu0
        %1137 = vmatpush.msra.mxu0 0.0
        %1138 = vmatpush.msra.mxu0 0.0
        %1139 = vmatpush.msra.mxu0 0.0
        %1140 = vmatpush.msra.mxu0 0.0
        %1141 = vmatpush.msra.mxu0 0.0
        %1142 = vmatpush.msra.mxu0 0.0
        %1143 = vmatpush.msra.mxu0 0.0
        %1144 = vmatpush.msra.mxu0 0.0
        %1145 = vmatpush.msra.mxu0 0.0
        %1146 = vmatpush.msra.mxu0 0.0
        %1147 = vmatpush.msra.mxu0 0.0
        %1148 = vmatpush.msra.mxu0 0.0
        %1149 = vmatpush.msra.mxu0 0.0
        %v1150 = vand.u32 %v1043, 4294901760
        %1151 = vmatpush.msra.mxu0 %v1150
        %v1152 = vand.u32 %v1019, 4294901760
        %1153 = vmatpush.msra.mxu0 %v1152
        %v1154 = vand.u32 %v1018, 4294901760
        %1155 = vmatpush.msra.mxu0 %v1154
        %v1156 = vand.u32 %v1039, 4294901760
        %v1157 = vsub.f32 %v1039, %v1156
        %v1158 = vand.u32 %v1157, 4294901760
        %1159 = vmatmul.f32.gmra.mxu0 %v1158
        %v1160 = vpop.f32.mrf.mxu0
        %v1161 = vadd.f32 %v1135, %v1160
        %1162 = vdwg.mxu0
        %1163 = vmatpush.msra.mxu0 0.0
        %1164 = vmatpush.msra.mxu0 0.0
        %1165 = vmatpush.msra.mxu0 0.0
        %1166 = vmatpush.msra.mxu0 0.0
        %1167 = vmatpush.msra.mxu0 0.0
        %1168 = vmatpush.msra.mxu0 0.0
        %1169 = vmatpush.msra.mxu0 0.0
        %1170 = vmatpush.msra.mxu0 0.0
        %1171 = vmatpush.msra.mxu0 0.0
        %1172 = vmatpush.msra.mxu0 0.0
        %1173 = vmatpush.msra.mxu0 0.0
        %1174 = vmatpush.msra.mxu0 0.0
        %1175 = vmatpush.msra.mxu0 0.0
        %v1176 = vand.u32 %v1043, 4294901760
        %v1177 = vsub.f32 %v1043, %v1176
        %v1178 = vand.u32 %v1177, 4294901760
        %1179 = vmatpush.msra.mxu0 %v1178
        %v1180 = vand.u32 %v1019, 4294901760
        %v1181 = vsub.f32 %v1019, %v1180
        %v1182 = vand.u32 %v1181, 4294901760
        %1183 = vmatpush.msra.mxu0 %v1182
        %v1184 = vand.u32 %v1018, 4294901760
        %v1185 = vsub.f32 %v1018, %v1184
        %v1186 = vand.u32 %v1185, 4294901760
        %1187 = vmatpush.msra.mxu0 %v1186
        %v1188 = vand.u32 %v1039, 4294901760
        %1189 = vmatmul.f32.gmra.mxu0 %v1188
        %v1190 = vpop.f32.mrf.mxu0
        %v1191 = vadd.f32 %v1161, %v1190
        %1192 = vdwg.mxu0
        %1193 = vmatpush.msra.mxu0 0.0
        %1194 = vmatpush.msra.mxu0 0.0
        %1195 = vmatpush.msra.mxu0 0.0
        %1196 = vmatpush.msra.mxu0 0.0
        %1197 = vmatpush.msra.mxu0 0.0
        %1198 = vmatpush.msra.mxu0 0.0
        %1199 = vmatpush.msra.mxu0 0.0
        %1200 = vmatpush.msra.mxu0 0.0
        %1201 = vmatpush.msra.mxu0 0.0
        %1202 = vmatpush.msra.mxu0 0.0
        %1203 = vmatpush.msra.mxu0 0.0
        %1204 = vmatpush.msra.mxu0 0.0
        %1205 = vmatpush.msra.mxu0 0.0
        %v1206 = vand.u32 %v1043, 4294901760
        %1207 = vmatpush.msra.mxu0 %v1206
        %v1208 = vand.u32 %v1019, 4294901760
        %1209 = vmatpush.msra.mxu0 %v1208
        %v1210 = vand.u32 %v1018, 4294901760
        %1211 = vmatpush.msra.mxu0 %v1210
        %v1212 = vand.u32 %v1039, 4294901760
        %1213 = vmatmul.f32.gmra.mxu0 %v1212
        %v1214 = vpop.f32.mrf.mxu0
        %v1215 = vadd.f32 %v1191, %v1214
        %1216 = vdwg.mxu0
        %v1217 = vrot.slane %v1013, 1
        %v1218 = vsel %vm1027, %v1014, %v1217
        %v1219 = vrot.slane %v1015, 7
        %v1220 = vsel %vm1030, %v1219, %v1218
        %v1221 = vrot.slane %v1016, 6
        %v1222 = vsel %vm1033, %v1221, %v1220
        %v1223 = vrot.slane %v1017, 5
        %v1224 = vsel %vm1036, %v1223, %v1222
        %v1225 = vsel %vm1038, %v1224, 0
        %1227 = vmatpush.msra.mxu0 0.0
        %1228 = vmatpush.msra.mxu0 0.0
        %1229 = vmatpush.msra.mxu0 0.0
        %1230 = vmatpush.msra.mxu0 0.0
        %1231 = vmatpush.msra.mxu0 0.0
        %1232 = vmatpush.msra.mxu0 0.0
        %1233 = vmatpush.msra.mxu0 0.0
        %1234 = vmatpush.msra.mxu0 0.0
        %1235 = vmatpush.msra.mxu0 0.0
        %1236 = vmatpush.msra.mxu0 0.0
        %1237 = vmatpush.msra.mxu0 0.0
        %1238 = vmatpush.msra.mxu0 0.0
        %1239 = vmatpush.msra.mxu0 0.0
        %v1240 = vand.u32 %v1043, 4294901760
        %1241 = vmatpush.msra.mxu0 %v1240
        %v1242 = vand.u32 %v1019, 4294901760
        %1243 = vmatpush.msra.mxu0 %v1242
        %v1244 = vand.u32 %v1018, 4294901760
        %1245 = vmatpush.msra.mxu0 %v1244
        %v1246 = vand.u32 %v1225, 4294901760
        %v1247 = vsub.f32 %v1225, %v1246
        %v1248 = vand.u32 %v1247, 4294901760
        %v1249 = vsub.f32 %v1247, %v1248
        %v1250 = vand.u32 %v1249, 4294901760
        %1251 = vmatmul.f32.gmra.mxu0 %v1250
        %v1252 = vpop.f32.mrf.mxu0
        %v1253 = vadd.f32 0.0, %v1252
        %1254 = vdwg.mxu0
        %1255 = vmatpush.msra.mxu0 0.0
        %1256 = vmatpush.msra.mxu0 0.0
        %1257 = vmatpush.msra.mxu0 0.0
        %1258 = vmatpush.msra.mxu0 0.0
        %1259 = vmatpush.msra.mxu0 0.0
        %1260 = vmatpush.msra.mxu0 0.0
        %1261 = vmatpush.msra.mxu0 0.0
        %1262 = vmatpush.msra.mxu0 0.0
        %1263 = vmatpush.msra.mxu0 0.0
        %1264 = vmatpush.msra.mxu0 0.0
        %1265 = vmatpush.msra.mxu0 0.0
        %1266 = vmatpush.msra.mxu0 0.0
        %1267 = vmatpush.msra.mxu0 0.0
        %v1268 = vand.u32 %v1043, 4294901760
        %v1269 = vsub.f32 %v1043, %v1268
        %v1270 = vand.u32 %v1269, 4294901760
        %v1271 = vsub.f32 %v1269, %v1270
        %v1272 = vand.u32 %v1271, 4294901760
        %1273 = vmatpush.msra.mxu0 %v1272
        %v1274 = vand.u32 %v1019, 4294901760
        %v1275 = vsub.f32 %v1019, %v1274
        %v1276 = vand.u32 %v1275, 4294901760
        %v1277 = vsub.f32 %v1275, %v1276
        %v1278 = vand.u32 %v1277, 4294901760
        %1279 = vmatpush.msra.mxu0 %v1278
        %v1280 = vand.u32 %v1018, 4294901760
        %v1281 = vsub.f32 %v1018, %v1280
        %v1282 = vand.u32 %v1281, 4294901760
        %v1283 = vsub.f32 %v1281, %v1282
        %v1284 = vand.u32 %v1283, 4294901760
        %1285 = vmatpush.msra.mxu0 %v1284
        %v1286 = vand.u32 %v1225, 4294901760
        %1287 = vmatmul.f32.gmra.mxu0 %v1286
        %v1288 = vpop.f32.mrf.mxu0
        %v1289 = vadd.f32 %v1253, %v1288
        %1290 = vdwg.mxu0
        %1291 = vmatpush.msra.mxu0 0.0
        %1292 = vmatpush.msra.mxu0 0.0
        %1293 = vmatpush.msra.mxu0 0.0
        %1294 = vmatpush.msra.mxu0 0.0
        %1295 = vmatpush.msra.mxu0 0.0
        %1296 = vmatpush.msra.mxu0 0.0
        %1297 = vmatpush.msra.mxu0 0.0
        %1298 = vmatpush.msra.mxu0 0.0
        %1299 = vmatpush.msra.mxu0 0.0
        %1300 = vmatpush.msra.mxu0 0.0
        %1301 = vmatpush.msra.mxu0 0.0
        %1302 = vmatpush.msra.mxu0 0.0
        %1303 = vmatpush.msra.mxu0 0.0
        %v1304 = vand.u32 %v1043, 4294901760
        %v1305 = vsub.f32 %v1043, %v1304
        %1306 = vmatpush.msra.mxu0 %v1305
        %v1307 = vand.u32 %v1019, 4294901760
        %v1308 = vsub.f32 %v1019, %v1307
        %1309 = vmatpush.msra.mxu0 %v1308
        %v1310 = vand.u32 %v1018, 4294901760
        %v1311 = vsub.f32 %v1018, %v1310
        %1312 = vmatpush.msra.mxu0 %v1311
        %v1313 = vand.u32 %v1225, 4294901760
        %v1314 = vsub.f32 %v1225, %v1313
        %1315 = vmatmul.f32.gmra.mxu0 %v1314
        %v1316 = vpop.f32.mrf.mxu0
        %v1317 = vadd.f32 %v1289, %v1316
        %1318 = vdwg.mxu0
        %1319 = vmatpush.msra.mxu0 0.0
        %1320 = vmatpush.msra.mxu0 0.0
        %1321 = vmatpush.msra.mxu0 0.0
        %1322 = vmatpush.msra.mxu0 0.0
        %1323 = vmatpush.msra.mxu0 0.0
        %1324 = vmatpush.msra.mxu0 0.0
        %1325 = vmatpush.msra.mxu0 0.0
        %1326 = vmatpush.msra.mxu0 0.0
        %1327 = vmatpush.msra.mxu0 0.0
        %1328 = vmatpush.msra.mxu0 0.0
        %1329 = vmatpush.msra.mxu0 0.0
        %1330 = vmatpush.msra.mxu0 0.0
        %1331 = vmatpush.msra.mxu0 0.0
        %v1332 = vand.u32 %v1043, 4294901760
        %1333 = vmatpush.msra.mxu0 %v1332
        %v1334 = vand.u32 %v1019, 4294901760
        %1335 = vmatpush.msra.mxu0 %v1334
        %v1336 = vand.u32 %v1018, 4294901760
        %1337 = vmatpush.msra.mxu0 %v1336
        %v1338 = vand.u32 %v1225, 4294901760
        %v1339 = vsub.f32 %v1225, %v1338
        %v1340 = vand.u32 %v1339, 4294901760
        %1341 = vmatmul.f32.gmra.mxu0 %v1340
        %v1342 = vpop.f32.mrf.mxu0
        %v1343 = vadd.f32 %v1317, %v1342
        %1344 = vdwg.mxu0
        %1345 = vmatpush.msra.mxu0 0.0
        %1346 = vmatpush.msra.mxu0 0.0
        %1347 = vmatpush.msra.mxu0 0.0
        %1348 = vmatpush.msra.mxu0 0.0
        %1349 = vmatpush.msra.mxu0 0.0
        %1350 = vmatpush.msra.mxu0 0.0
        %1351 = vmatpush.msra.mxu0 0.0
        %1352 = vmatpush.msra.mxu0 0.0
        %1353 = vmatpush.msra.mxu0 0.0
        %1354 = vmatpush.msra.mxu0 0.0
        %1355 = vmatpush.msra.mxu0 0.0
        %1356 = vmatpush.msra.mxu0 0.0
        %1357 = vmatpush.msra.mxu0 0.0
        %v1358 = vand.u32 %v1043, 4294901760
        %v1359 = vsub.f32 %v1043, %v1358
        %v1360 = vand.u32 %v1359, 4294901760
        %1361 = vmatpush.msra.mxu0 %v1360
        %v1362 = vand.u32 %v1019, 4294901760
        %v1363 = vsub.f32 %v1019, %v1362
        %v1364 = vand.u32 %v1363, 4294901760
        %1365 = vmatpush.msra.mxu0 %v1364
        %v1366 = vand.u32 %v1018, 4294901760
        %v1367 = vsub.f32 %v1018, %v1366
        %v1368 = vand.u32 %v1367, 4294901760
        %1369 = vmatpush.msra.mxu0 %v1368
        %v1370 = vand.u32 %v1225, 4294901760
        %1371 = vmatmul.f32.gmra.mxu0 %v1370
        %v1372 = vpop.f32.mrf.mxu0
        %v1373 = vadd.f32 %v1343, %v1372
        %1374 = vdwg.mxu0
        %1375 = vmatpush.msra.mxu0 0.0
        %1376 = vmatpush.msra.mxu0 0.0
        %1377 = vmatpush.msra.mxu0 0.0
        %1378 = vmatpush.msra.mxu0 0.0
        %1379 = vmatpush.msra.mxu0 0.0
        %1380 = vmatpush.msra.mxu0 0.0
        %1381 = vmatpush.msra.mxu0 0.0
        %1382 = vmatpush.msra.mxu0 0.0
        %1383 = vmatpush.msra.mxu0 0.0
        %1384 = vmatpush.msra.mxu0 0.0
        %1385 = vmatpush.msra.mxu0 0.0
        %1386 = vmatpush.msra.mxu0 0.0
        %1387 = vmatpush.msra.mxu0 0.0
        %v1388 = vand.u32 %v1043, 4294901760
        %1389 = vmatpush.msra.mxu0 %v1388
        %v1390 = vand.u32 %v1019, 4294901760
        %1391 = vmatpush.msra.mxu0 %v1390
        %v1392 = vand.u32 %v1018, 4294901760
        %1393 = vmatpush.msra.mxu0 %v1392
        %v1394 = vand.u32 %v1225, 4294901760
        %1395 = vmatmul.f32.gmra.mxu0 %v1394
        %v1396 = vpop.f32.mrf.mxu0
        %v1397 = vadd.f32 %v1373, %v1396
        %1398 = vdwg.mxu0
        %v1399 = vld [vmem:[%s7] sm:$0xff]
        %v1400 = vld [vmem:[%s7 + $0x8] sm:$0xff]
        %v1401 = vld [vmem:[%s7 + $0x10] sm:$0xff]
        %v1402 = vld [vmem:[%s7 + $0x18] sm:$0xff]
        %v1403 = vld [vmem:[%s7 + $0x20] sm:$0xff]
        %v1404 = vld [vmem:[%s7 + $0x28] sm:$0xff]
        %v1405 = vld [vmem:[%s7 + $0x30] sm:$0xff]
        %v1406 = vld [vmem:[%s7 + $0x38] sm:$0xff]
        %v1407 = vld [vmem:[%s7 + $0x40] sm:$0xff]
        %v1408 = vld [vmem:[%s7 + $0x48] sm:$0xff]
        %v1409 = vld [vmem:[%s7 + $0x50] sm:$0xff]
        %v1410 = vld [vmem:[%s7 + $0x58] sm:$0xff]
        %v1411 = vld [vmem:[%s7 + $0x60] sm:$0xff]
        %v1412 = vld [vmem:[%s7 + $0x68] sm:$0xff]
        %v1413 = vld [vmem:[%s7 + $0x70] sm:$0xff]
        %v1414 = vld [vmem:[%s7 + $0x78] sm:$0xff]
        %v1415 = vld [vmem:[%s7 + $0x80] sm:$0xff]
        %v1416 = vld [vmem:[%s7 + $0x88] sm:$0xff]
        %v1417 = vld [vmem:[%s7 + $0x90] sm:$0xff]
        %v1418 = vld [vmem:[%s7 + $0x98] sm:$0xff]
        %v1419 = vld [vmem:[%s6] sm:$0xff]
        %v1420 = vld [vmem:[%s6 + $0x8] sm:$0xff]
        %v1421 = vld [vmem:[%s6 + $0x10] sm:$0xff]
        %v1422 = vld [vmem:[%s6 + $0x18] sm:$0xff]
        %v1424 = vrot.slane %v1215, 1
        %v1425 = vrot.slane %v1215, 2
        %v1426 = vrot.slane %v1215, 3
        %v1427 = vrot.slane %v1215, 4
        %v1428 = vperm.slane %v1215, 0
        %v1429 = vperm.slane %v1424, 0
        %v1430 = vperm.slane %v1425, 0
        %v1431 = vperm.slane %v1426, 0
        %v1432 = vperm.slane %v1427, 0
        %1439 = vset.pattern.permute.xlu0 0
        %1440 = vperm.xlu0 %1439, %v1419
        %v1441 = vpop.permute.xlu0 %1440
        %1444 = vset.pattern.permute.xlu0 0
        %1445 = vperm.xlu0 %1444, %v1420
        %v1446 = vpop.permute.xlu0 %1445
        %1449 = vset.pattern.permute.xlu0 0
        %1450 = vperm.xlu0 %1449, %v1421
        %v1451 = vpop.permute.xlu0 %1450
        %1454 = vset.pattern.permute.xlu0 0
        %1455 = vperm.xlu0 %1454, %v1422
        %v1456 = vpop.permute.xlu0 %1455
        %v1458 = vmul.f32 %v1428, %v1441
        %v1459 = vmul.f32 %v1428, %v1446
        %v1460 = vmul.f32 %v1428, %v1451
        %v1461 = vmul.f32 %v1428, %v1456
        %v1462 = vmul.f32 %v1429, %v1441
        %v1463 = vmul.f32 %v1429, %v1446
        %v1464 = vmul.f32 %v1429, %v1451
        %v1465 = vmul.f32 %v1429, %v1456
        %v1466 = vmul.f32 %v1430, %v1441
        %v1467 = vmul.f32 %v1430, %v1446
        %v1468 = vmul.f32 %v1430, %v1451
        %v1469 = vmul.f32 %v1430, %v1456
        %v1470 = vmul.f32 %v1431, %v1441
        %v1471 = vmul.f32 %v1431, %v1446
        %v1472 = vmul.f32 %v1431, %v1451
        %v1473 = vmul.f32 %v1431, %v1456
        %v1474 = vmul.f32 %v1432, %v1441
        %v1475 = vmul.f32 %v1432, %v1446
        %v1476 = vmul.f32 %v1432, %v1451
        %v1477 = vmul.f32 %v1432, %v1456
        %v1479 = vsel %vm366, %v1399, 0
        %v1482 = vsel %vm366, %v1400, 0
        %v1485 = vsel %vm366, %v1401, 0
        %v1488 = vsel %vm366, %v1402, 0
        %1490 = vmatpush.msra.mxu0 0.0
        %1491 = vmatpush.msra.mxu0 0.0
        %1492 = vmatpush.msra.mxu0 0.0
        %1493 = vmatpush.msra.mxu0 0.0
        %1494 = vmatpush.msra.mxu0 0.0
        %1495 = vmatpush.msra.mxu0 0.0
        %1496 = vmatpush.msra.mxu0 0.0
        %1497 = vmatpush.msra.mxu0 0.0
        %1498 = vmatpush.msra.mxu0 0.0
        %1499 = vmatpush.msra.mxu0 0.0
        %1500 = vmatpush.msra.mxu0 0.0
        %1501 = vmatpush.msra.mxu0 0.0
        %1502 = vmatpush.msra.mxu0 0.0
        %1503 = vmatpush.msra.mxu0 0.0
        %v1504 = vand.u32 %v1004, 4294901760
        %1505 = vmatpush.msra.mxu0 %v1504
        %v1506 = vand.u32 %v1003, 4294901760
        %1507 = vmatpush.msra.mxu0 %v1506
        %v1508 = vand.u32 %v1479, 4294901760
        %v1509 = vsub.f32 %v1479, %v1508
        %v1510 = vand.u32 %v1509, 4294901760
        %v1511 = vsub.f32 %v1509, %v1510
        %v1512 = vand.u32 %v1511, 4294901760
        %1513 = vmatmul.f32.gmra.mxu0 %v1512
        %v1514 = vpop.f32.mrf.mxu0
        %v1515 = vadd.f32 %v1458, %v1514
        %v1516 = vand.u32 %v1482, 4294901760
        %v1517 = vsub.f32 %v1482, %v1516
        %v1518 = vand.u32 %v1517, 4294901760
        %v1519 = vsub.f32 %v1517, %v1518
        %v1520 = vand.u32 %v1519, 4294901760
        %1521 = vmatmul.f32.gmra.mxu0 %v1520
        %v1522 = vpop.f32.mrf.mxu0
        %v1523 = vadd.f32 %v1459, %v1522
        %v1524 = vand.u32 %v1485, 4294901760
        %v1525 = vsub.f32 %v1485, %v1524
        %v1526 = vand.u32 %v1525, 4294901760
        %v1527 = vsub.f32 %v1525, %v1526
        %v1528 = vand.u32 %v1527, 4294901760
        %1529 = vmatmul.f32.gmra.mxu0 %v1528
        %v1530 = vpop.f32.mrf.mxu0
        %v1531 = vadd.f32 %v1460, %v1530
        %v1532 = vand.u32 %v1488, 4294901760
        %v1533 = vsub.f32 %v1488, %v1532
        %v1534 = vand.u32 %v1533, 4294901760
        %v1535 = vsub.f32 %v1533, %v1534
        %v1536 = vand.u32 %v1535, 4294901760
        %1537 = vmatmul.f32.gmra.mxu0 %v1536
        %v1538 = vpop.f32.mrf.mxu0
        %v1539 = vadd.f32 %v1461, %v1538
        %1540 = vdwg.mxu0
        %1541 = vmatpush.msra.mxu0 0.0
        %1542 = vmatpush.msra.mxu0 0.0
        %1543 = vmatpush.msra.mxu0 0.0
        %1544 = vmatpush.msra.mxu0 0.0
        %1545 = vmatpush.msra.mxu0 0.0
        %1546 = vmatpush.msra.mxu0 0.0
        %1547 = vmatpush.msra.mxu0 0.0
        %1548 = vmatpush.msra.mxu0 0.0
        %1549 = vmatpush.msra.mxu0 0.0
        %1550 = vmatpush.msra.mxu0 0.0
        %1551 = vmatpush.msra.mxu0 0.0
        %1552 = vmatpush.msra.mxu0 0.0
        %1553 = vmatpush.msra.mxu0 0.0
        %1554 = vmatpush.msra.mxu0 0.0
        %v1555 = vand.u32 %v1004, 4294901760
        %v1556 = vsub.f32 %v1004, %v1555
        %v1557 = vand.u32 %v1556, 4294901760
        %v1558 = vsub.f32 %v1556, %v1557
        %v1559 = vand.u32 %v1558, 4294901760
        %1560 = vmatpush.msra.mxu0 %v1559
        %v1561 = vand.u32 %v1003, 4294901760
        %v1562 = vsub.f32 %v1003, %v1561
        %v1563 = vand.u32 %v1562, 4294901760
        %v1564 = vsub.f32 %v1562, %v1563
        %v1565 = vand.u32 %v1564, 4294901760
        %1566 = vmatpush.msra.mxu0 %v1565
        %v1567 = vand.u32 %v1479, 4294901760
        %1568 = vmatmul.f32.gmra.mxu0 %v1567
        %v1569 = vpop.f32.mrf.mxu0
        %v1570 = vadd.f32 %v1515, %v1569
        %v1571 = vand.u32 %v1482, 4294901760
        %1572 = vmatmul.f32.gmra.mxu0 %v1571
        %v1573 = vpop.f32.mrf.mxu0
        %v1574 = vadd.f32 %v1523, %v1573
        %v1575 = vand.u32 %v1485, 4294901760
        %1576 = vmatmul.f32.gmra.mxu0 %v1575
        %v1577 = vpop.f32.mrf.mxu0
        %v1578 = vadd.f32 %v1531, %v1577
        %v1579 = vand.u32 %v1488, 4294901760
        %1580 = vmatmul.f32.gmra.mxu0 %v1579
        %v1581 = vpop.f32.mrf.mxu0
        %v1582 = vadd.f32 %v1539, %v1581
        %1583 = vdwg.mxu0
        %1584 = vmatpush.msra.mxu0 0.0
        %1585 = vmatpush.msra.mxu0 0.0
        %1586 = vmatpush.msra.mxu0 0.0
        %1587 = vmatpush.msra.mxu0 0.0
        %1588 = vmatpush.msra.mxu0 0.0
        %1589 = vmatpush.msra.mxu0 0.0
        %1590 = vmatpush.msra.mxu0 0.0
        %1591 = vmatpush.msra.mxu0 0.0
        %1592 = vmatpush.msra.mxu0 0.0
        %1593 = vmatpush.msra.mxu0 0.0
        %1594 = vmatpush.msra.mxu0 0.0
        %1595 = vmatpush.msra.mxu0 0.0
        %1596 = vmatpush.msra.mxu0 0.0
        %1597 = vmatpush.msra.mxu0 0.0
        %v1598 = vand.u32 %v1004, 4294901760
        %v1599 = vsub.f32 %v1004, %v1598
        %1600 = vmatpush.msra.mxu0 %v1599
        %v1601 = vand.u32 %v1003, 4294901760
        %v1602 = vsub.f32 %v1003, %v1601
        %1603 = vmatpush.msra.mxu0 %v1602
        %v1604 = vand.u32 %v1479, 4294901760
        %v1605 = vsub.f32 %v1479, %v1604
        %1606 = vmatmul.f32.gmra.mxu0 %v1605
        %v1607 = vpop.f32.mrf.mxu0
        %v1608 = vadd.f32 %v1570, %v1607
        %v1609 = vand.u32 %v1482, 4294901760
        %v1610 = vsub.f32 %v1482, %v1609
        %1611 = vmatmul.f32.gmra.mxu0 %v1610
        %v1612 = vpop.f32.mrf.mxu0
        %v1613 = vadd.f32 %v1574, %v1612
        %v1614 = vand.u32 %v1485, 4294901760
        %v1615 = vsub.f32 %v1485, %v1614
        %1616 = vmatmul.f32.gmra.mxu0 %v1615
        %v1617 = vpop.f32.mrf.mxu0
        %v1618 = vadd.f32 %v1578, %v1617
        %v1619 = vand.u32 %v1488, 4294901760
        %v1620 = vsub.f32 %v1488, %v1619
        %1621 = vmatmul.f32.gmra.mxu0 %v1620
        %v1622 = vpop.f32.mrf.mxu0
        %v1623 = vadd.f32 %v1582, %v1622
        %1624 = vdwg.mxu0
        %1625 = vmatpush.msra.mxu0 0.0
        %1626 = vmatpush.msra.mxu0 0.0
        %1627 = vmatpush.msra.mxu0 0.0
        %1628 = vmatpush.msra.mxu0 0.0
        %1629 = vmatpush.msra.mxu0 0.0
        %1630 = vmatpush.msra.mxu0 0.0
        %1631 = vmatpush.msra.mxu0 0.0
        %1632 = vmatpush.msra.mxu0 0.0
        %1633 = vmatpush.msra.mxu0 0.0
        %1634 = vmatpush.msra.mxu0 0.0
        %1635 = vmatpush.msra.mxu0 0.0
        %1636 = vmatpush.msra.mxu0 0.0
        %1637 = vmatpush.msra.mxu0 0.0
        %1638 = vmatpush.msra.mxu0 0.0
        %v1639 = vand.u32 %v1004, 4294901760
        %1640 = vmatpush.msra.mxu0 %v1639
        %v1641 = vand.u32 %v1003, 4294901760
        %1642 = vmatpush.msra.mxu0 %v1641
        %v1643 = vand.u32 %v1479, 4294901760
        %v1644 = vsub.f32 %v1479, %v1643
        %v1645 = vand.u32 %v1644, 4294901760
        %1646 = vmatmul.f32.gmra.mxu0 %v1645
        %v1647 = vpop.f32.mrf.mxu0
        %v1648 = vadd.f32 %v1608, %v1647
        %v1649 = vand.u32 %v1482, 4294901760
        %v1650 = vsub.f32 %v1482, %v1649
        %v1651 = vand.u32 %v1650, 4294901760
        %1652 = vmatmul.f32.gmra.mxu0 %v1651
        %v1653 = vpop.f32.mrf.mxu0
        %v1654 = vadd.f32 %v1613, %v1653
        %v1655 = vand.u32 %v1485, 4294901760
        %v1656 = vsub.f32 %v1485, %v1655
        %v1657 = vand.u32 %v1656, 4294901760
        %1658 = vmatmul.f32.gmra.mxu0 %v1657
        %v1659 = vpop.f32.mrf.mxu0
        %v1660 = vadd.f32 %v1618, %v1659
        %v1661 = vand.u32 %v1488, 4294901760
        %v1662 = vsub.f32 %v1488, %v1661
        %v1663 = vand.u32 %v1662, 4294901760
        %1664 = vmatmul.f32.gmra.mxu0 %v1663
        %v1665 = vpop.f32.mrf.mxu0
        %v1666 = vadd.f32 %v1623, %v1665
        %1667 = vdwg.mxu0
        %1668 = vmatpush.msra.mxu0 0.0
        %1669 = vmatpush.msra.mxu0 0.0
        %1670 = vmatpush.msra.mxu0 0.0
        %1671 = vmatpush.msra.mxu0 0.0
        %1672 = vmatpush.msra.mxu0 0.0
        %1673 = vmatpush.msra.mxu0 0.0
        %1674 = vmatpush.msra.mxu0 0.0
        %1675 = vmatpush.msra.mxu0 0.0
        %1676 = vmatpush.msra.mxu0 0.0
        %1677 = vmatpush.msra.mxu0 0.0
        %1678 = vmatpush.msra.mxu0 0.0
        %1679 = vmatpush.msra.mxu0 0.0
        %1680 = vmatpush.msra.mxu0 0.0
        %1681 = vmatpush.msra.mxu0 0.0
        %v1682 = vand.u32 %v1004, 4294901760
        %v1683 = vsub.f32 %v1004, %v1682
        %v1684 = vand.u32 %v1683, 4294901760
        %1685 = vmatpush.msra.mxu0 %v1684
        %v1686 = vand.u32 %v1003, 4294901760
        %v1687 = vsub.f32 %v1003, %v1686
        %v1688 = vand.u32 %v1687, 4294901760
        %1689 = vmatpush.msra.mxu0 %v1688
        %v1690 = vand.u32 %v1479, 4294901760
        %1691 = vmatmul.f32.gmra.mxu0 %v1690
        %v1692 = vpop.f32.mrf.mxu0
        %v1693 = vadd.f32 %v1648, %v1692
        %v1694 = vand.u32 %v1482, 4294901760
        %1695 = vmatmul.f32.gmra.mxu0 %v1694
        %v1696 = vpop.f32.mrf.mxu0
        %v1697 = vadd.f32 %v1654, %v1696
        %v1698 = vand.u32 %v1485, 4294901760
        %1699 = vmatmul.f32.gmra.mxu0 %v1698
        %v1700 = vpop.f32.mrf.mxu0
        %v1701 = vadd.f32 %v1660, %v1700
        %v1702 = vand.u32 %v1488, 4294901760
        %1703 = vmatmul.f32.gmra.mxu0 %v1702
        %v1704 = vpop.f32.mrf.mxu0
        %v1705 = vadd.f32 %v1666, %v1704
        %1706 = vdwg.mxu0
        %1707 = vmatpush.msra.mxu0 0.0
        %1708 = vmatpush.msra.mxu0 0.0
        %1709 = vmatpush.msra.mxu0 0.0
        %1710 = vmatpush.msra.mxu0 0.0
        %1711 = vmatpush.msra.mxu0 0.0
        %1712 = vmatpush.msra.mxu0 0.0
        %1713 = vmatpush.msra.mxu0 0.0
        %1714 = vmatpush.msra.mxu0 0.0
        %1715 = vmatpush.msra.mxu0 0.0
        %1716 = vmatpush.msra.mxu0 0.0
        %1717 = vmatpush.msra.mxu0 0.0
        %1718 = vmatpush.msra.mxu0 0.0
        %1719 = vmatpush.msra.mxu0 0.0
        %1720 = vmatpush.msra.mxu0 0.0
        %v1721 = vand.u32 %v1004, 4294901760
        %1722 = vmatpush.msra.mxu0 %v1721
        %v1723 = vand.u32 %v1003, 4294901760
        %1724 = vmatpush.msra.mxu0 %v1723
        %v1725 = vand.u32 %v1479, 4294901760
        %1726 = vmatmul.f32.gmra.mxu0 %v1725
        %v1727 = vpop.f32.mrf.mxu0
        %v1728 = vadd.f32 %v1693, %v1727
        %v1729 = vand.u32 %v1482, 4294901760
        %1730 = vmatmul.f32.gmra.mxu0 %v1729
        %v1731 = vpop.f32.mrf.mxu0
        %v1732 = vadd.f32 %v1697, %v1731
        %v1733 = vand.u32 %v1485, 4294901760
        %1734 = vmatmul.f32.gmra.mxu0 %v1733
        %v1735 = vpop.f32.mrf.mxu0
        %v1736 = vadd.f32 %v1701, %v1735
        %v1737 = vand.u32 %v1488, 4294901760
        %1738 = vmatmul.f32.gmra.mxu0 %v1737
        %v1739 = vpop.f32.mrf.mxu0
        %v1740 = vadd.f32 %v1705, %v1739
        %1741 = vdwg.mxu0
        %v1743 = vsel %vm366, %v1403, 0
        %v1746 = vsel %vm366, %v1404, 0
        %v1749 = vsel %vm366, %v1405, 0
        %v1752 = vsel %vm366, %v1406, 0
        %1754 = vmatpush.msra.mxu0 0.0
        %1755 = vmatpush.msra.mxu0 0.0
        %1756 = vmatpush.msra.mxu0 0.0
        %1757 = vmatpush.msra.mxu0 0.0
        %1758 = vmatpush.msra.mxu0 0.0
        %1759 = vmatpush.msra.mxu0 0.0
        %1760 = vmatpush.msra.mxu0 0.0
        %1761 = vmatpush.msra.mxu0 0.0
        %1762 = vmatpush.msra.mxu0 0.0
        %1763 = vmatpush.msra.mxu0 0.0
        %1764 = vmatpush.msra.mxu0 0.0
        %1765 = vmatpush.msra.mxu0 0.0
        %1766 = vmatpush.msra.mxu0 0.0
        %1767 = vmatpush.msra.mxu0 0.0
        %v1768 = vand.u32 %v1006, 4294901760
        %1769 = vmatpush.msra.mxu0 %v1768
        %v1770 = vand.u32 %v1005, 4294901760
        %1771 = vmatpush.msra.mxu0 %v1770
        %v1772 = vand.u32 %v1743, 4294901760
        %v1773 = vsub.f32 %v1743, %v1772
        %v1774 = vand.u32 %v1773, 4294901760
        %v1775 = vsub.f32 %v1773, %v1774
        %v1776 = vand.u32 %v1775, 4294901760
        %1777 = vmatmul.f32.gmra.mxu0 %v1776
        %v1778 = vpop.f32.mrf.mxu0
        %v1779 = vadd.f32 %v1462, %v1778
        %v1780 = vand.u32 %v1746, 4294901760
        %v1781 = vsub.f32 %v1746, %v1780
        %v1782 = vand.u32 %v1781, 4294901760
        %v1783 = vsub.f32 %v1781, %v1782
        %v1784 = vand.u32 %v1783, 4294901760
        %1785 = vmatmul.f32.gmra.mxu0 %v1784
        %v1786 = vpop.f32.mrf.mxu0
        %v1787 = vadd.f32 %v1463, %v1786
        %v1788 = vand.u32 %v1749, 4294901760
        %v1789 = vsub.f32 %v1749, %v1788
        %v1790 = vand.u32 %v1789, 4294901760
        %v1791 = vsub.f32 %v1789, %v1790
        %v1792 = vand.u32 %v1791, 4294901760
        %1793 = vmatmul.f32.gmra.mxu0 %v1792
        %v1794 = vpop.f32.mrf.mxu0
        %v1795 = vadd.f32 %v1464, %v1794
        %v1796 = vand.u32 %v1752, 4294901760
        %v1797 = vsub.f32 %v1752, %v1796
        %v1798 = vand.u32 %v1797, 4294901760
        %v1799 = vsub.f32 %v1797, %v1798
        %v1800 = vand.u32 %v1799, 4294901760
        %1801 = vmatmul.f32.gmra.mxu0 %v1800
        %v1802 = vpop.f32.mrf.mxu0
        %v1803 = vadd.f32 %v1465, %v1802
        %1804 = vdwg.mxu0
        %1805 = vmatpush.msra.mxu0 0.0
        %1806 = vmatpush.msra.mxu0 0.0
        %1807 = vmatpush.msra.mxu0 0.0
        %1808 = vmatpush.msra.mxu0 0.0
        %1809 = vmatpush.msra.mxu0 0.0
        %1810 = vmatpush.msra.mxu0 0.0
        %1811 = vmatpush.msra.mxu0 0.0
        %1812 = vmatpush.msra.mxu0 0.0
        %1813 = vmatpush.msra.mxu0 0.0
        %1814 = vmatpush.msra.mxu0 0.0
        %1815 = vmatpush.msra.mxu0 0.0
        %1816 = vmatpush.msra.mxu0 0.0
        %1817 = vmatpush.msra.mxu0 0.0
        %1818 = vmatpush.msra.mxu0 0.0
        %v1819 = vand.u32 %v1006, 4294901760
        %v1820 = vsub.f32 %v1006, %v1819
        %v1821 = vand.u32 %v1820, 4294901760
        %v1822 = vsub.f32 %v1820, %v1821
        %v1823 = vand.u32 %v1822, 4294901760
        %1824 = vmatpush.msra.mxu0 %v1823
        %v1825 = vand.u32 %v1005, 4294901760
        %v1826 = vsub.f32 %v1005, %v1825
        %v1827 = vand.u32 %v1826, 4294901760
        %v1828 = vsub.f32 %v1826, %v1827
        %v1829 = vand.u32 %v1828, 4294901760
        %1830 = vmatpush.msra.mxu0 %v1829
        %v1831 = vand.u32 %v1743, 4294901760
        %1832 = vmatmul.f32.gmra.mxu0 %v1831
        %v1833 = vpop.f32.mrf.mxu0
        %v1834 = vadd.f32 %v1779, %v1833
        %v1835 = vand.u32 %v1746, 4294901760
        %1836 = vmatmul.f32.gmra.mxu0 %v1835
        %v1837 = vpop.f32.mrf.mxu0
        %v1838 = vadd.f32 %v1787, %v1837
        %v1839 = vand.u32 %v1749, 4294901760
        %1840 = vmatmul.f32.gmra.mxu0 %v1839
        %v1841 = vpop.f32.mrf.mxu0
        %v1842 = vadd.f32 %v1795, %v1841
        %v1843 = vand.u32 %v1752, 4294901760
        %1844 = vmatmul.f32.gmra.mxu0 %v1843
        %v1845 = vpop.f32.mrf.mxu0
        %v1846 = vadd.f32 %v1803, %v1845
        %1847 = vdwg.mxu0
        %1848 = vmatpush.msra.mxu0 0.0
        %1849 = vmatpush.msra.mxu0 0.0
        %1850 = vmatpush.msra.mxu0 0.0
        %1851 = vmatpush.msra.mxu0 0.0
        %1852 = vmatpush.msra.mxu0 0.0
        %1853 = vmatpush.msra.mxu0 0.0
        %1854 = vmatpush.msra.mxu0 0.0
        %1855 = vmatpush.msra.mxu0 0.0
        %1856 = vmatpush.msra.mxu0 0.0
        %1857 = vmatpush.msra.mxu0 0.0
        %1858 = vmatpush.msra.mxu0 0.0
        %1859 = vmatpush.msra.mxu0 0.0
        %1860 = vmatpush.msra.mxu0 0.0
        %1861 = vmatpush.msra.mxu0 0.0
        %v1862 = vand.u32 %v1006, 4294901760
        %v1863 = vsub.f32 %v1006, %v1862
        %1864 = vmatpush.msra.mxu0 %v1863
        %v1865 = vand.u32 %v1005, 4294901760
        %v1866 = vsub.f32 %v1005, %v1865
        %1867 = vmatpush.msra.mxu0 %v1866
        %v1868 = vand.u32 %v1743, 4294901760
        %v1869 = vsub.f32 %v1743, %v1868
        %1870 = vmatmul.f32.gmra.mxu0 %v1869
        %v1871 = vpop.f32.mrf.mxu0
        %v1872 = vadd.f32 %v1834, %v1871
        %v1873 = vand.u32 %v1746, 4294901760
        %v1874 = vsub.f32 %v1746, %v1873
        %1875 = vmatmul.f32.gmra.mxu0 %v1874
        %v1876 = vpop.f32.mrf.mxu0
        %v1877 = vadd.f32 %v1838, %v1876
        %v1878 = vand.u32 %v1749, 4294901760
        %v1879 = vsub.f32 %v1749, %v1878
        %1880 = vmatmul.f32.gmra.mxu0 %v1879
        %v1881 = vpop.f32.mrf.mxu0
        %v1882 = vadd.f32 %v1842, %v1881
        %v1883 = vand.u32 %v1752, 4294901760
        %v1884 = vsub.f32 %v1752, %v1883
        %1885 = vmatmul.f32.gmra.mxu0 %v1884
        %v1886 = vpop.f32.mrf.mxu0
        %v1887 = vadd.f32 %v1846, %v1886
        %1888 = vdwg.mxu0
        %1889 = vmatpush.msra.mxu0 0.0
        %1890 = vmatpush.msra.mxu0 0.0
        %1891 = vmatpush.msra.mxu0 0.0
        %1892 = vmatpush.msra.mxu0 0.0
        %1893 = vmatpush.msra.mxu0 0.0
        %1894 = vmatpush.msra.mxu0 0.0
        %1895 = vmatpush.msra.mxu0 0.0
        %1896 = vmatpush.msra.mxu0 0.0
        %1897 = vmatpush.msra.mxu0 0.0
        %1898 = vmatpush.msra.mxu0 0.0
        %1899 = vmatpush.msra.mxu0 0.0
        %1900 = vmatpush.msra.mxu0 0.0
        %1901 = vmatpush.msra.mxu0 0.0
        %1902 = vmatpush.msra.mxu0 0.0
        %v1903 = vand.u32 %v1006, 4294901760
        %1904 = vmatpush.msra.mxu0 %v1903
        %v1905 = vand.u32 %v1005, 4294901760
        %1906 = vmatpush.msra.mxu0 %v1905
        %v1907 = vand.u32 %v1743, 4294901760
        %v1908 = vsub.f32 %v1743, %v1907
        %v1909 = vand.u32 %v1908, 4294901760
        %1910 = vmatmul.f32.gmra.mxu0 %v1909
        %v1911 = vpop.f32.mrf.mxu0
        %v1912 = vadd.f32 %v1872, %v1911
        %v1913 = vand.u32 %v1746, 4294901760
        %v1914 = vsub.f32 %v1746, %v1913
        %v1915 = vand.u32 %v1914, 4294901760
        %1916 = vmatmul.f32.gmra.mxu0 %v1915
        %v1917 = vpop.f32.mrf.mxu0
        %v1918 = vadd.f32 %v1877, %v1917
        %v1919 = vand.u32 %v1749, 4294901760
        %v1920 = vsub.f32 %v1749, %v1919
        %v1921 = vand.u32 %v1920, 4294901760
        %1922 = vmatmul.f32.gmra.mxu0 %v1921
        %v1923 = vpop.f32.mrf.mxu0
        %v1924 = vadd.f32 %v1882, %v1923
        %v1925 = vand.u32 %v1752, 4294901760
        %v1926 = vsub.f32 %v1752, %v1925
        %v1927 = vand.u32 %v1926, 4294901760
        %1928 = vmatmul.f32.gmra.mxu0 %v1927
        %v1929 = vpop.f32.mrf.mxu0
        %v1930 = vadd.f32 %v1887, %v1929
        %1931 = vdwg.mxu0
        %1932 = vmatpush.msra.mxu0 0.0
        %1933 = vmatpush.msra.mxu0 0.0
        %1934 = vmatpush.msra.mxu0 0.0
        %1935 = vmatpush.msra.mxu0 0.0
        %1936 = vmatpush.msra.mxu0 0.0
        %1937 = vmatpush.msra.mxu0 0.0
        %1938 = vmatpush.msra.mxu0 0.0
        %1939 = vmatpush.msra.mxu0 0.0
        %1940 = vmatpush.msra.mxu0 0.0
        %1941 = vmatpush.msra.mxu0 0.0
        %1942 = vmatpush.msra.mxu0 0.0
        %1943 = vmatpush.msra.mxu0 0.0
        %1944 = vmatpush.msra.mxu0 0.0
        %1945 = vmatpush.msra.mxu0 0.0
        %v1946 = vand.u32 %v1006, 4294901760
        %v1947 = vsub.f32 %v1006, %v1946
        %v1948 = vand.u32 %v1947, 4294901760
        %1949 = vmatpush.msra.mxu0 %v1948
        %v1950 = vand.u32 %v1005, 4294901760
        %v1951 = vsub.f32 %v1005, %v1950
        %v1952 = vand.u32 %v1951, 4294901760
        %1953 = vmatpush.msra.mxu0 %v1952
        %v1954 = vand.u32 %v1743, 4294901760
        %1955 = vmatmul.f32.gmra.mxu0 %v1954
        %v1956 = vpop.f32.mrf.mxu0
        %v1957 = vadd.f32 %v1912, %v1956
        %v1958 = vand.u32 %v1746, 4294901760
        %1959 = vmatmul.f32.gmra.mxu0 %v1958
        %v1960 = vpop.f32.mrf.mxu0
        %v1961 = vadd.f32 %v1918, %v1960
        %v1962 = vand.u32 %v1749, 4294901760
        %1963 = vmatmul.f32.gmra.mxu0 %v1962
        %v1964 = vpop.f32.mrf.mxu0
        %v1965 = vadd.f32 %v1924, %v1964
        %v1966 = vand.u32 %v1752, 4294901760
        %1967 = vmatmul.f32.gmra.mxu0 %v1966
        %v1968 = vpop.f32.mrf.mxu0
        %v1969 = vadd.f32 %v1930, %v1968
        %1970 = vdwg.mxu0
        %1971 = vmatpush.msra.mxu0 0.0
        %1972 = vmatpush.msra.mxu0 0.0
        %1973 = vmatpush.msra.mxu0 0.0
        %1974 = vmatpush.msra.mxu0 0.0
        %1975 = vmatpush.msra.mxu0 0.0
        %1976 = vmatpush.msra.mxu0 0.0
        %1977 = vmatpush.msra.mxu0 0.0
        %1978 = vmatpush.msra.mxu0 0.0
        %1979 = vmatpush.msra.mxu0 0.0
        %1980 = vmatpush.msra.mxu0 0.0
        %1981 = vmatpush.msra.mxu0 0.0
        %1982 = vmatpush.msra.mxu0 0.0
        %1983 = vmatpush.msra.mxu0 0.0
        %1984 = vmatpush.msra.mxu0 0.0
        %v1985 = vand.u32 %v1006, 4294901760
        %1986 = vmatpush.msra.mxu0 %v1985
        %v1987 = vand.u32 %v1005, 4294901760
        %1988 = vmatpush.msra.mxu0 %v1987
        %v1989 = vand.u32 %v1743, 4294901760
        %1990 = vmatmul.f32.gmra.mxu0 %v1989
        %v1991 = vpop.f32.mrf.mxu0
        %v1992 = vadd.f32 %v1957, %v1991
        %v1993 = vand.u32 %v1746, 4294901760
        %1994 = vmatmul.f32.gmra.mxu0 %v1993
        %v1995 = vpop.f32.mrf.mxu0
        %v1996 = vadd.f32 %v1961, %v1995
        %v1997 = vand.u32 %v1749, 4294901760
        %1998 = vmatmul.f32.gmra.mxu0 %v1997
        %v1999 = vpop.f32.mrf.mxu0
        %v2000 = vadd.f32 %v1965, %v1999
        %v2001 = vand.u32 %v1752, 4294901760
        %2002 = vmatmul.f32.gmra.mxu0 %v2001
        %v2003 = vpop.f32.mrf.mxu0
        %v2004 = vadd.f32 %v1969, %v2003
        %2005 = vdwg.mxu0
        %v2007 = vsel %vm366, %v1407, 0
        %v2010 = vsel %vm366, %v1408, 0
        %v2013 = vsel %vm366, %v1409, 0
        %v2016 = vsel %vm366, %v1410, 0
        %2018 = vmatpush.msra.mxu0 0.0
        %2019 = vmatpush.msra.mxu0 0.0
        %2020 = vmatpush.msra.mxu0 0.0
        %2021 = vmatpush.msra.mxu0 0.0
        %2022 = vmatpush.msra.mxu0 0.0
        %2023 = vmatpush.msra.mxu0 0.0
        %2024 = vmatpush.msra.mxu0 0.0
        %2025 = vmatpush.msra.mxu0 0.0
        %2026 = vmatpush.msra.mxu0 0.0
        %2027 = vmatpush.msra.mxu0 0.0
        %2028 = vmatpush.msra.mxu0 0.0
        %2029 = vmatpush.msra.mxu0 0.0
        %2030 = vmatpush.msra.mxu0 0.0
        %2031 = vmatpush.msra.mxu0 0.0
        %v2032 = vand.u32 %v1008, 4294901760
        %2033 = vmatpush.msra.mxu0 %v2032
        %v2034 = vand.u32 %v1007, 4294901760
        %2035 = vmatpush.msra.mxu0 %v2034
        %v2036 = vand.u32 %v2007, 4294901760
        %v2037 = vsub.f32 %v2007, %v2036
        %v2038 = vand.u32 %v2037, 4294901760
        %v2039 = vsub.f32 %v2037, %v2038
        %v2040 = vand.u32 %v2039, 4294901760
        %2041 = vmatmul.f32.gmra.mxu0 %v2040
        %v2042 = vpop.f32.mrf.mxu0
        %v2043 = vadd.f32 %v1466, %v2042
        %v2044 = vand.u32 %v2010, 4294901760
        %v2045 = vsub.f32 %v2010, %v2044
        %v2046 = vand.u32 %v2045, 4294901760
        %v2047 = vsub.f32 %v2045, %v2046
        %v2048 = vand.u32 %v2047, 4294901760
        %2049 = vmatmul.f32.gmra.mxu0 %v2048
        %v2050 = vpop.f32.mrf.mxu0
        %v2051 = vadd.f32 %v1467, %v2050
        %v2052 = vand.u32 %v2013, 4294901760
        %v2053 = vsub.f32 %v2013, %v2052
        %v2054 = vand.u32 %v2053, 4294901760
        %v2055 = vsub.f32 %v2053, %v2054
        %v2056 = vand.u32 %v2055, 4294901760
        %2057 = vmatmul.f32.gmra.mxu0 %v2056
        %v2058 = vpop.f32.mrf.mxu0
        %v2059 = vadd.f32 %v1468, %v2058
        %v2060 = vand.u32 %v2016, 4294901760
        %v2061 = vsub.f32 %v2016, %v2060
        %v2062 = vand.u32 %v2061, 4294901760
        %v2063 = vsub.f32 %v2061, %v2062
        %v2064 = vand.u32 %v2063, 4294901760
        %2065 = vmatmul.f32.gmra.mxu0 %v2064
        %v2066 = vpop.f32.mrf.mxu0
        %v2067 = vadd.f32 %v1469, %v2066
        %2068 = vdwg.mxu0
        %2069 = vmatpush.msra.mxu0 0.0
        %2070 = vmatpush.msra.mxu0 0.0
        %2071 = vmatpush.msra.mxu0 0.0
        %2072 = vmatpush.msra.mxu0 0.0
        %2073 = vmatpush.msra.mxu0 0.0
        %2074 = vmatpush.msra.mxu0 0.0
        %2075 = vmatpush.msra.mxu0 0.0
        %2076 = vmatpush.msra.mxu0 0.0
        %2077 = vmatpush.msra.mxu0 0.0
        %2078 = vmatpush.msra.mxu0 0.0
        %2079 = vmatpush.msra.mxu0 0.0
        %2080 = vmatpush.msra.mxu0 0.0
        %2081 = vmatpush.msra.mxu0 0.0
        %2082 = vmatpush.msra.mxu0 0.0
        %v2083 = vand.u32 %v1008, 4294901760
        %v2084 = vsub.f32 %v1008, %v2083
        %v2085 = vand.u32 %v2084, 4294901760
        %v2086 = vsub.f32 %v2084, %v2085
        %v2087 = vand.u32 %v2086, 4294901760
        %2088 = vmatpush.msra.mxu0 %v2087
        %v2089 = vand.u32 %v1007, 4294901760
        %v2090 = vsub.f32 %v1007, %v2089
        %v2091 = vand.u32 %v2090, 4294901760
        %v2092 = vsub.f32 %v2090, %v2091
        %v2093 = vand.u32 %v2092, 4294901760
        %2094 = vmatpush.msra.mxu0 %v2093
        %v2095 = vand.u32 %v2007, 4294901760
        %2096 = vmatmul.f32.gmra.mxu0 %v2095
        %v2097 = vpop.f32.mrf.mxu0
        %v2098 = vadd.f32 %v2043, %v2097
        %v2099 = vand.u32 %v2010, 4294901760
        %2100 = vmatmul.f32.gmra.mxu0 %v2099
        %v2101 = vpop.f32.mrf.mxu0
        %v2102 = vadd.f32 %v2051, %v2101
        %v2103 = vand.u32 %v2013, 4294901760
        %2104 = vmatmul.f32.gmra.mxu0 %v2103
        %v2105 = vpop.f32.mrf.mxu0
        %v2106 = vadd.f32 %v2059, %v2105
        %v2107 = vand.u32 %v2016, 4294901760
        %2108 = vmatmul.f32.gmra.mxu0 %v2107
        %v2109 = vpop.f32.mrf.mxu0
        %v2110 = vadd.f32 %v2067, %v2109
        %2111 = vdwg.mxu0
        %2112 = vmatpush.msra.mxu0 0.0
        %2113 = vmatpush.msra.mxu0 0.0
        %2114 = vmatpush.msra.mxu0 0.0
        %2115 = vmatpush.msra.mxu0 0.0
        %2116 = vmatpush.msra.mxu0 0.0
        %2117 = vmatpush.msra.mxu0 0.0
        %2118 = vmatpush.msra.mxu0 0.0
        %2119 = vmatpush.msra.mxu0 0.0
        %2120 = vmatpush.msra.mxu0 0.0
        %2121 = vmatpush.msra.mxu0 0.0
        %2122 = vmatpush.msra.mxu0 0.0
        %2123 = vmatpush.msra.mxu0 0.0
        %2124 = vmatpush.msra.mxu0 0.0
        %2125 = vmatpush.msra.mxu0 0.0
        %v2126 = vand.u32 %v1008, 4294901760
        %v2127 = vsub.f32 %v1008, %v2126
        %2128 = vmatpush.msra.mxu0 %v2127
        %v2129 = vand.u32 %v1007, 4294901760
        %v2130 = vsub.f32 %v1007, %v2129
        %2131 = vmatpush.msra.mxu0 %v2130
        %v2132 = vand.u32 %v2007, 4294901760
        %v2133 = vsub.f32 %v2007, %v2132
        %2134 = vmatmul.f32.gmra.mxu0 %v2133
        %v2135 = vpop.f32.mrf.mxu0
        %v2136 = vadd.f32 %v2098, %v2135
        %v2137 = vand.u32 %v2010, 4294901760
        %v2138 = vsub.f32 %v2010, %v2137
        %2139 = vmatmul.f32.gmra.mxu0 %v2138
        %v2140 = vpop.f32.mrf.mxu0
        %v2141 = vadd.f32 %v2102, %v2140
        %v2142 = vand.u32 %v2013, 4294901760
        %v2143 = vsub.f32 %v2013, %v2142
        %2144 = vmatmul.f32.gmra.mxu0 %v2143
        %v2145 = vpop.f32.mrf.mxu0
        %v2146 = vadd.f32 %v2106, %v2145
        %v2147 = vand.u32 %v2016, 4294901760
        %v2148 = vsub.f32 %v2016, %v2147
        %2149 = vmatmul.f32.gmra.mxu0 %v2148
        %v2150 = vpop.f32.mrf.mxu0
        %v2151 = vadd.f32 %v2110, %v2150
        %2152 = vdwg.mxu0
        %2153 = vmatpush.msra.mxu0 0.0
        %2154 = vmatpush.msra.mxu0 0.0
        %2155 = vmatpush.msra.mxu0 0.0
        %2156 = vmatpush.msra.mxu0 0.0
        %2157 = vmatpush.msra.mxu0 0.0
        %2158 = vmatpush.msra.mxu0 0.0
        %2159 = vmatpush.msra.mxu0 0.0
        %2160 = vmatpush.msra.mxu0 0.0
        %2161 = vmatpush.msra.mxu0 0.0
        %2162 = vmatpush.msra.mxu0 0.0
        %2163 = vmatpush.msra.mxu0 0.0
        %2164 = vmatpush.msra.mxu0 0.0
        %2165 = vmatpush.msra.mxu0 0.0
        %2166 = vmatpush.msra.mxu0 0.0
        %v2167 = vand.u32 %v1008, 4294901760
        %2168 = vmatpush.msra.mxu0 %v2167
        %v2169 = vand.u32 %v1007, 4294901760
        %2170 = vmatpush.msra.mxu0 %v2169
        %v2171 = vand.u32 %v2007, 4294901760
        %v2172 = vsub.f32 %v2007, %v2171
        %v2173 = vand.u32 %v2172, 4294901760
        %2174 = vmatmul.f32.gmra.mxu0 %v2173
        %v2175 = vpop.f32.mrf.mxu0
        %v2176 = vadd.f32 %v2136, %v2175
        %v2177 = vand.u32 %v2010, 4294901760
        %v2178 = vsub.f32 %v2010, %v2177
        %v2179 = vand.u32 %v2178, 4294901760
        %2180 = vmatmul.f32.gmra.mxu0 %v2179
        %v2181 = vpop.f32.mrf.mxu0
        %v2182 = vadd.f32 %v2141, %v2181
        %v2183 = vand.u32 %v2013, 4294901760
        %v2184 = vsub.f32 %v2013, %v2183
        %v2185 = vand.u32 %v2184, 4294901760
        %2186 = vmatmul.f32.gmra.mxu0 %v2185
        %v2187 = vpop.f32.mrf.mxu0
        %v2188 = vadd.f32 %v2146, %v2187
        %v2189 = vand.u32 %v2016, 4294901760
        %v2190 = vsub.f32 %v2016, %v2189
        %v2191 = vand.u32 %v2190, 4294901760
        %2192 = vmatmul.f32.gmra.mxu0 %v2191
        %v2193 = vpop.f32.mrf.mxu0
        %v2194 = vadd.f32 %v2151, %v2193
        %2195 = vdwg.mxu0
        %2196 = vmatpush.msra.mxu0 0.0
        %2197 = vmatpush.msra.mxu0 0.0
        %2198 = vmatpush.msra.mxu0 0.0
        %2199 = vmatpush.msra.mxu0 0.0
        %2200 = vmatpush.msra.mxu0 0.0
        %2201 = vmatpush.msra.mxu0 0.0
        %2202 = vmatpush.msra.mxu0 0.0
        %2203 = vmatpush.msra.mxu0 0.0
        %2204 = vmatpush.msra.mxu0 0.0
        %2205 = vmatpush.msra.mxu0 0.0
        %2206 = vmatpush.msra.mxu0 0.0
        %2207 = vmatpush.msra.mxu0 0.0
        %2208 = vmatpush.msra.mxu0 0.0
        %2209 = vmatpush.msra.mxu0 0.0
        %v2210 = vand.u32 %v1008, 4294901760
        %v2211 = vsub.f32 %v1008, %v2210
        %v2212 = vand.u32 %v2211, 4294901760
        %2213 = vmatpush.msra.mxu0 %v2212
        %v2214 = vand.u32 %v1007, 4294901760
        %v2215 = vsub.f32 %v1007, %v2214
        %v2216 = vand.u32 %v2215, 4294901760
        %2217 = vmatpush.msra.mxu0 %v2216
        %v2218 = vand.u32 %v2007, 4294901760
        %2219 = vmatmul.f32.gmra.mxu0 %v2218
        %v2220 = vpop.f32.mrf.mxu0
        %v2221 = vadd.f32 %v2176, %v2220
        %v2222 = vand.u32 %v2010, 4294901760
        %2223 = vmatmul.f32.gmra.mxu0 %v2222
        %v2224 = vpop.f32.mrf.mxu0
        %v2225 = vadd.f32 %v2182, %v2224
        %v2226 = vand.u32 %v2013, 4294901760
        %2227 = vmatmul.f32.gmra.mxu0 %v2226
        %v2228 = vpop.f32.mrf.mxu0
        %v2229 = vadd.f32 %v2188, %v2228
        %v2230 = vand.u32 %v2016, 4294901760
        %2231 = vmatmul.f32.gmra.mxu0 %v2230
        %v2232 = vpop.f32.mrf.mxu0
        %v2233 = vadd.f32 %v2194, %v2232
        %2234 = vdwg.mxu0
        %2235 = vmatpush.msra.mxu0 0.0
        %2236 = vmatpush.msra.mxu0 0.0
        %2237 = vmatpush.msra.mxu0 0.0
        %2238 = vmatpush.msra.mxu0 0.0
        %2239 = vmatpush.msra.mxu0 0.0
        %2240 = vmatpush.msra.mxu0 0.0
        %2241 = vmatpush.msra.mxu0 0.0
        %2242 = vmatpush.msra.mxu0 0.0
        %2243 = vmatpush.msra.mxu0 0.0
        %2244 = vmatpush.msra.mxu0 0.0
        %2245 = vmatpush.msra.mxu0 0.0
        %2246 = vmatpush.msra.mxu0 0.0
        %2247 = vmatpush.msra.mxu0 0.0
        %2248 = vmatpush.msra.mxu0 0.0
        %v2249 = vand.u32 %v1008, 4294901760
        %2250 = vmatpush.msra.mxu0 %v2249
        %v2251 = vand.u32 %v1007, 4294901760
        %2252 = vmatpush.msra.mxu0 %v2251
        %v2253 = vand.u32 %v2007, 4294901760
        %2254 = vmatmul.f32.gmra.mxu0 %v2253
        %v2255 = vpop.f32.mrf.mxu0
        %v2256 = vadd.f32 %v2221, %v2255
        %v2257 = vand.u32 %v2010, 4294901760
        %2258 = vmatmul.f32.gmra.mxu0 %v2257
        %v2259 = vpop.f32.mrf.mxu0
        %v2260 = vadd.f32 %v2225, %v2259
        %v2261 = vand.u32 %v2013, 4294901760
        %2262 = vmatmul.f32.gmra.mxu0 %v2261
        %v2263 = vpop.f32.mrf.mxu0
        %v2264 = vadd.f32 %v2229, %v2263
        %v2265 = vand.u32 %v2016, 4294901760
        %2266 = vmatmul.f32.gmra.mxu0 %v2265
        %v2267 = vpop.f32.mrf.mxu0
        %v2268 = vadd.f32 %v2233, %v2267
        %2269 = vdwg.mxu0
        %v2271 = vsel %vm366, %v1411, 0
        %v2274 = vsel %vm366, %v1412, 0
        %v2277 = vsel %vm366, %v1413, 0
        %v2280 = vsel %vm366, %v1414, 0
        %2282 = vmatpush.msra.mxu0 0.0
        %2283 = vmatpush.msra.mxu0 0.0
        %2284 = vmatpush.msra.mxu0 0.0
        %2285 = vmatpush.msra.mxu0 0.0
        %2286 = vmatpush.msra.mxu0 0.0
        %2287 = vmatpush.msra.mxu0 0.0
        %2288 = vmatpush.msra.mxu0 0.0
        %2289 = vmatpush.msra.mxu0 0.0
        %2290 = vmatpush.msra.mxu0 0.0
        %2291 = vmatpush.msra.mxu0 0.0
        %2292 = vmatpush.msra.mxu0 0.0
        %2293 = vmatpush.msra.mxu0 0.0
        %2294 = vmatpush.msra.mxu0 0.0
        %2295 = vmatpush.msra.mxu0 0.0
        %v2296 = vand.u32 %v1010, 4294901760
        %2297 = vmatpush.msra.mxu0 %v2296
        %v2298 = vand.u32 %v1009, 4294901760
        %2299 = vmatpush.msra.mxu0 %v2298
        %v2300 = vand.u32 %v2271, 4294901760
        %v2301 = vsub.f32 %v2271, %v2300
        %v2302 = vand.u32 %v2301, 4294901760
        %v2303 = vsub.f32 %v2301, %v2302
        %v2304 = vand.u32 %v2303, 4294901760
        %2305 = vmatmul.f32.gmra.mxu0 %v2304
        %v2306 = vpop.f32.mrf.mxu0
        %v2307 = vadd.f32 %v1470, %v2306
        %v2308 = vand.u32 %v2274, 4294901760
        %v2309 = vsub.f32 %v2274, %v2308
        %v2310 = vand.u32 %v2309, 4294901760
        %v2311 = vsub.f32 %v2309, %v2310
        %v2312 = vand.u32 %v2311, 4294901760
        %2313 = vmatmul.f32.gmra.mxu0 %v2312
        %v2314 = vpop.f32.mrf.mxu0
        %v2315 = vadd.f32 %v1471, %v2314
        %v2316 = vand.u32 %v2277, 4294901760
        %v2317 = vsub.f32 %v2277, %v2316
        %v2318 = vand.u32 %v2317, 4294901760
        %v2319 = vsub.f32 %v2317, %v2318
        %v2320 = vand.u32 %v2319, 4294901760
        %2321 = vmatmul.f32.gmra.mxu0 %v2320
        %v2322 = vpop.f32.mrf.mxu0
        %v2323 = vadd.f32 %v1472, %v2322
        %v2324 = vand.u32 %v2280, 4294901760
        %v2325 = vsub.f32 %v2280, %v2324
        %v2326 = vand.u32 %v2325, 4294901760
        %v2327 = vsub.f32 %v2325, %v2326
        %v2328 = vand.u32 %v2327, 4294901760
        %2329 = vmatmul.f32.gmra.mxu0 %v2328
        %v2330 = vpop.f32.mrf.mxu0
        %v2331 = vadd.f32 %v1473, %v2330
        %2332 = vdwg.mxu0
        %2333 = vmatpush.msra.mxu0 0.0
        %2334 = vmatpush.msra.mxu0 0.0
        %2335 = vmatpush.msra.mxu0 0.0
        %2336 = vmatpush.msra.mxu0 0.0
        %2337 = vmatpush.msra.mxu0 0.0
        %2338 = vmatpush.msra.mxu0 0.0
        %2339 = vmatpush.msra.mxu0 0.0
        %2340 = vmatpush.msra.mxu0 0.0
        %2341 = vmatpush.msra.mxu0 0.0
        %2342 = vmatpush.msra.mxu0 0.0
        %2343 = vmatpush.msra.mxu0 0.0
        %2344 = vmatpush.msra.mxu0 0.0
        %2345 = vmatpush.msra.mxu0 0.0
        %2346 = vmatpush.msra.mxu0 0.0
        %v2347 = vand.u32 %v1010, 4294901760
        %v2348 = vsub.f32 %v1010, %v2347
        %v2349 = vand.u32 %v2348, 4294901760
        %v2350 = vsub.f32 %v2348, %v2349
        %v2351 = vand.u32 %v2350, 4294901760
        %2352 = vmatpush.msra.mxu0 %v2351
        %v2353 = vand.u32 %v1009, 4294901760
        %v2354 = vsub.f32 %v1009, %v2353
        %v2355 = vand.u32 %v2354, 4294901760
        %v2356 = vsub.f32 %v2354, %v2355
        %v2357 = vand.u32 %v2356, 4294901760
        %2358 = vmatpush.msra.mxu0 %v2357
        %v2359 = vand.u32 %v2271, 4294901760
        %2360 = vmatmul.f32.gmra.mxu0 %v2359
        %v2361 = vpop.f32.mrf.mxu0
        %v2362 = vadd.f32 %v2307, %v2361
        %v2363 = vand.u32 %v2274, 4294901760
        %2364 = vmatmul.f32.gmra.mxu0 %v2363
        %v2365 = vpop.f32.mrf.mxu0
        %v2366 = vadd.f32 %v2315, %v2365
        %v2367 = vand.u32 %v2277, 4294901760
        %2368 = vmatmul.f32.gmra.mxu0 %v2367
        %v2369 = vpop.f32.mrf.mxu0
        %v2370 = vadd.f32 %v2323, %v2369
        %v2371 = vand.u32 %v2280, 4294901760
        %2372 = vmatmul.f32.gmra.mxu0 %v2371
        %v2373 = vpop.f32.mrf.mxu0
        %v2374 = vadd.f32 %v2331, %v2373
        %2375 = vdwg.mxu0
        %2376 = vmatpush.msra.mxu0 0.0
        %2377 = vmatpush.msra.mxu0 0.0
        %2378 = vmatpush.msra.mxu0 0.0
        %2379 = vmatpush.msra.mxu0 0.0
        %2380 = vmatpush.msra.mxu0 0.0
        %2381 = vmatpush.msra.mxu0 0.0
        %2382 = vmatpush.msra.mxu0 0.0
        %2383 = vmatpush.msra.mxu0 0.0
        %2384 = vmatpush.msra.mxu0 0.0
        %2385 = vmatpush.msra.mxu0 0.0
        %2386 = vmatpush.msra.mxu0 0.0
        %2387 = vmatpush.msra.mxu0 0.0
        %2388 = vmatpush.msra.mxu0 0.0
        %2389 = vmatpush.msra.mxu0 0.0
        %v2390 = vand.u32 %v1010, 4294901760
        %v2391 = vsub.f32 %v1010, %v2390
        %2392 = vmatpush.msra.mxu0 %v2391
        %v2393 = vand.u32 %v1009, 4294901760
        %v2394 = vsub.f32 %v1009, %v2393
        %2395 = vmatpush.msra.mxu0 %v2394
        %v2396 = vand.u32 %v2271, 4294901760
        %v2397 = vsub.f32 %v2271, %v2396
        %2398 = vmatmul.f32.gmra.mxu0 %v2397
        %v2399 = vpop.f32.mrf.mxu0
        %v2400 = vadd.f32 %v2362, %v2399
        %v2401 = vand.u32 %v2274, 4294901760
        %v2402 = vsub.f32 %v2274, %v2401
        %2403 = vmatmul.f32.gmra.mxu0 %v2402
        %v2404 = vpop.f32.mrf.mxu0
        %v2405 = vadd.f32 %v2366, %v2404
        %v2406 = vand.u32 %v2277, 4294901760
        %v2407 = vsub.f32 %v2277, %v2406
        %2408 = vmatmul.f32.gmra.mxu0 %v2407
        %v2409 = vpop.f32.mrf.mxu0
        %v2410 = vadd.f32 %v2370, %v2409
        %v2411 = vand.u32 %v2280, 4294901760
        %v2412 = vsub.f32 %v2280, %v2411
        %2413 = vmatmul.f32.gmra.mxu0 %v2412
        %v2414 = vpop.f32.mrf.mxu0
        %v2415 = vadd.f32 %v2374, %v2414
        %2416 = vdwg.mxu0
        %2417 = vmatpush.msra.mxu0 0.0
        %2418 = vmatpush.msra.mxu0 0.0
        %2419 = vmatpush.msra.mxu0 0.0
        %2420 = vmatpush.msra.mxu0 0.0
        %2421 = vmatpush.msra.mxu0 0.0
        %2422 = vmatpush.msra.mxu0 0.0
        %2423 = vmatpush.msra.mxu0 0.0
        %2424 = vmatpush.msra.mxu0 0.0
        %2425 = vmatpush.msra.mxu0 0.0
        %2426 = vmatpush.msra.mxu0 0.0
        %2427 = vmatpush.msra.mxu0 0.0
        %2428 = vmatpush.msra.mxu0 0.0
        %2429 = vmatpush.msra.mxu0 0.0
        %2430 = vmatpush.msra.mxu0 0.0
        %v2431 = vand.u32 %v1010, 4294901760
        %2432 = vmatpush.msra.mxu0 %v2431
        %v2433 = vand.u32 %v1009, 4294901760
        %2434 = vmatpush.msra.mxu0 %v2433
        %v2435 = vand.u32 %v2271, 4294901760
        %v2436 = vsub.f32 %v2271, %v2435
        %v2437 = vand.u32 %v2436, 4294901760
        %2438 = vmatmul.f32.gmra.mxu0 %v2437
        %v2439 = vpop.f32.mrf.mxu0
        %v2440 = vadd.f32 %v2400, %v2439
        %v2441 = vand.u32 %v2274, 4294901760
        %v2442 = vsub.f32 %v2274, %v2441
        %v2443 = vand.u32 %v2442, 4294901760
        %2444 = vmatmul.f32.gmra.mxu0 %v2443
        %v2445 = vpop.f32.mrf.mxu0
        %v2446 = vadd.f32 %v2405, %v2445
        %v2447 = vand.u32 %v2277, 4294901760
        %v2448 = vsub.f32 %v2277, %v2447
        %v2449 = vand.u32 %v2448, 4294901760
        %2450 = vmatmul.f32.gmra.mxu0 %v2449
        %v2451 = vpop.f32.mrf.mxu0
        %v2452 = vadd.f32 %v2410, %v2451
        %v2453 = vand.u32 %v2280, 4294901760
        %v2454 = vsub.f32 %v2280, %v2453
        %v2455 = vand.u32 %v2454, 4294901760
        %2456 = vmatmul.f32.gmra.mxu0 %v2455
        %v2457 = vpop.f32.mrf.mxu0
        %v2458 = vadd.f32 %v2415, %v2457
        %2459 = vdwg.mxu0
        %2460 = vmatpush.msra.mxu0 0.0
        %2461 = vmatpush.msra.mxu0 0.0
        %2462 = vmatpush.msra.mxu0 0.0
        %2463 = vmatpush.msra.mxu0 0.0
        %2464 = vmatpush.msra.mxu0 0.0
        %2465 = vmatpush.msra.mxu0 0.0
        %2466 = vmatpush.msra.mxu0 0.0
        %2467 = vmatpush.msra.mxu0 0.0
        %2468 = vmatpush.msra.mxu0 0.0
        %2469 = vmatpush.msra.mxu0 0.0
        %2470 = vmatpush.msra.mxu0 0.0
        %2471 = vmatpush.msra.mxu0 0.0
        %2472 = vmatpush.msra.mxu0 0.0
        %2473 = vmatpush.msra.mxu0 0.0
        %v2474 = vand.u32 %v1010, 4294901760
        %v2475 = vsub.f32 %v1010, %v2474
        %v2476 = vand.u32 %v2475, 4294901760
        %2477 = vmatpush.msra.mxu0 %v2476
        %v2478 = vand.u32 %v1009, 4294901760
        %v2479 = vsub.f32 %v1009, %v2478
        %v2480 = vand.u32 %v2479, 4294901760
        %2481 = vmatpush.msra.mxu0 %v2480
        %v2482 = vand.u32 %v2271, 4294901760
        %2483 = vmatmul.f32.gmra.mxu0 %v2482
        %v2484 = vpop.f32.mrf.mxu0
        %v2485 = vadd.f32 %v2440, %v2484
        %v2486 = vand.u32 %v2274, 4294901760
        %2487 = vmatmul.f32.gmra.mxu0 %v2486
        %v2488 = vpop.f32.mrf.mxu0
        %v2489 = vadd.f32 %v2446, %v2488
        %v2490 = vand.u32 %v2277, 4294901760
        %2491 = vmatmul.f32.gmra.mxu0 %v2490
        %v2492 = vpop.f32.mrf.mxu0
        %v2493 = vadd.f32 %v2452, %v2492
        %v2494 = vand.u32 %v2280, 4294901760
        %2495 = vmatmul.f32.gmra.mxu0 %v2494
        %v2496 = vpop.f32.mrf.mxu0
        %v2497 = vadd.f32 %v2458, %v2496
        %2498 = vdwg.mxu0
        %2499 = vmatpush.msra.mxu0 0.0
        %2500 = vmatpush.msra.mxu0 0.0
        %2501 = vmatpush.msra.mxu0 0.0
        %2502 = vmatpush.msra.mxu0 0.0
        %2503 = vmatpush.msra.mxu0 0.0
        %2504 = vmatpush.msra.mxu0 0.0
        %2505 = vmatpush.msra.mxu0 0.0
        %2506 = vmatpush.msra.mxu0 0.0
        %2507 = vmatpush.msra.mxu0 0.0
        %2508 = vmatpush.msra.mxu0 0.0
        %2509 = vmatpush.msra.mxu0 0.0
        %2510 = vmatpush.msra.mxu0 0.0
        %2511 = vmatpush.msra.mxu0 0.0
        %2512 = vmatpush.msra.mxu0 0.0
        %v2513 = vand.u32 %v1010, 4294901760
        %2514 = vmatpush.msra.mxu0 %v2513
        %v2515 = vand.u32 %v1009, 4294901760
        %2516 = vmatpush.msra.mxu0 %v2515
        %v2517 = vand.u32 %v2271, 4294901760
        %2518 = vmatmul.f32.gmra.mxu0 %v2517
        %v2519 = vpop.f32.mrf.mxu0
        %v2520 = vadd.f32 %v2485, %v2519
        %v2521 = vand.u32 %v2274, 4294901760
        %2522 = vmatmul.f32.gmra.mxu0 %v2521
        %v2523 = vpop.f32.mrf.mxu0
        %v2524 = vadd.f32 %v2489, %v2523
        %v2525 = vand.u32 %v2277, 4294901760
        %2526 = vmatmul.f32.gmra.mxu0 %v2525
        %v2527 = vpop.f32.mrf.mxu0
        %v2528 = vadd.f32 %v2493, %v2527
        %v2529 = vand.u32 %v2280, 4294901760
        %2530 = vmatmul.f32.gmra.mxu0 %v2529
        %v2531 = vpop.f32.mrf.mxu0
        %v2532 = vadd.f32 %v2497, %v2531
        %2533 = vdwg.mxu0
        %v2535 = vsel %vm366, %v1415, 0
        %v2538 = vsel %vm366, %v1416, 0
        %v2541 = vsel %vm366, %v1417, 0
        %v2544 = vsel %vm366, %v1418, 0
        %2546 = vmatpush.msra.mxu0 0.0
        %2547 = vmatpush.msra.mxu0 0.0
        %2548 = vmatpush.msra.mxu0 0.0
        %2549 = vmatpush.msra.mxu0 0.0
        %2550 = vmatpush.msra.mxu0 0.0
        %2551 = vmatpush.msra.mxu0 0.0
        %2552 = vmatpush.msra.mxu0 0.0
        %2553 = vmatpush.msra.mxu0 0.0
        %2554 = vmatpush.msra.mxu0 0.0
        %2555 = vmatpush.msra.mxu0 0.0
        %2556 = vmatpush.msra.mxu0 0.0
        %2557 = vmatpush.msra.mxu0 0.0
        %2558 = vmatpush.msra.mxu0 0.0
        %2559 = vmatpush.msra.mxu0 0.0
        %v2560 = vand.u32 %v1012, 4294901760
        %2561 = vmatpush.msra.mxu0 %v2560
        %v2562 = vand.u32 %v1011, 4294901760
        %2563 = vmatpush.msra.mxu0 %v2562
        %v2564 = vand.u32 %v2535, 4294901760
        %v2565 = vsub.f32 %v2535, %v2564
        %v2566 = vand.u32 %v2565, 4294901760
        %v2567 = vsub.f32 %v2565, %v2566
        %v2568 = vand.u32 %v2567, 4294901760
        %2569 = vmatmul.f32.gmra.mxu0 %v2568
        %v2570 = vpop.f32.mrf.mxu0
        %v2571 = vadd.f32 %v1474, %v2570
        %v2572 = vand.u32 %v2538, 4294901760
        %v2573 = vsub.f32 %v2538, %v2572
        %v2574 = vand.u32 %v2573, 4294901760
        %v2575 = vsub.f32 %v2573, %v2574
        %v2576 = vand.u32 %v2575, 4294901760
        %2577 = vmatmul.f32.gmra.mxu0 %v2576
        %v2578 = vpop.f32.mrf.mxu0
        %v2579 = vadd.f32 %v1475, %v2578
        %v2580 = vand.u32 %v2541, 4294901760
        %v2581 = vsub.f32 %v2541, %v2580
        %v2582 = vand.u32 %v2581, 4294901760
        %v2583 = vsub.f32 %v2581, %v2582
        %v2584 = vand.u32 %v2583, 4294901760
        %2585 = vmatmul.f32.gmra.mxu0 %v2584
        %v2586 = vpop.f32.mrf.mxu0
        %v2587 = vadd.f32 %v1476, %v2586
        %v2588 = vand.u32 %v2544, 4294901760
        %v2589 = vsub.f32 %v2544, %v2588
        %v2590 = vand.u32 %v2589, 4294901760
        %v2591 = vsub.f32 %v2589, %v2590
        %v2592 = vand.u32 %v2591, 4294901760
        %2593 = vmatmul.f32.gmra.mxu0 %v2592
        %v2594 = vpop.f32.mrf.mxu0
        %v2595 = vadd.f32 %v1477, %v2594
        %2596 = vdwg.mxu0
        %2597 = vmatpush.msra.mxu0 0.0
        %2598 = vmatpush.msra.mxu0 0.0
        %2599 = vmatpush.msra.mxu0 0.0
        %2600 = vmatpush.msra.mxu0 0.0
        %2601 = vmatpush.msra.mxu0 0.0
        %2602 = vmatpush.msra.mxu0 0.0
        %2603 = vmatpush.msra.mxu0 0.0
        %2604 = vmatpush.msra.mxu0 0.0
        %2605 = vmatpush.msra.mxu0 0.0
        %2606 = vmatpush.msra.mxu0 0.0
        %2607 = vmatpush.msra.mxu0 0.0
        %2608 = vmatpush.msra.mxu0 0.0
        %2609 = vmatpush.msra.mxu0 0.0
        %2610 = vmatpush.msra.mxu0 0.0
        %v2611 = vand.u32 %v1012, 4294901760
        %v2612 = vsub.f32 %v1012, %v2611
        %v2613 = vand.u32 %v2612, 4294901760
        %v2614 = vsub.f32 %v2612, %v2613
        %v2615 = vand.u32 %v2614, 4294901760
        %2616 = vmatpush.msra.mxu0 %v2615
        %v2617 = vand.u32 %v1011, 4294901760
        %v2618 = vsub.f32 %v1011, %v2617
        %v2619 = vand.u32 %v2618, 4294901760
        %v2620 = vsub.f32 %v2618, %v2619
        %v2621 = vand.u32 %v2620, 4294901760
        %2622 = vmatpush.msra.mxu0 %v2621
        %v2623 = vand.u32 %v2535, 4294901760
        %2624 = vmatmul.f32.gmra.mxu0 %v2623
        %v2625 = vpop.f32.mrf.mxu0
        %v2626 = vadd.f32 %v2571, %v2625
        %v2627 = vand.u32 %v2538, 4294901760
        %2628 = vmatmul.f32.gmra.mxu0 %v2627
        %v2629 = vpop.f32.mrf.mxu0
        %v2630 = vadd.f32 %v2579, %v2629
        %v2631 = vand.u32 %v2541, 4294901760
        %2632 = vmatmul.f32.gmra.mxu0 %v2631
        %v2633 = vpop.f32.mrf.mxu0
        %v2634 = vadd.f32 %v2587, %v2633
        %v2635 = vand.u32 %v2544, 4294901760
        %2636 = vmatmul.f32.gmra.mxu0 %v2635
        %v2637 = vpop.f32.mrf.mxu0
        %v2638 = vadd.f32 %v2595, %v2637
        %2639 = vdwg.mxu0
        %2640 = vmatpush.msra.mxu0 0.0
        %2641 = vmatpush.msra.mxu0 0.0
        %2642 = vmatpush.msra.mxu0 0.0
        %2643 = vmatpush.msra.mxu0 0.0
        %2644 = vmatpush.msra.mxu0 0.0
        %2645 = vmatpush.msra.mxu0 0.0
        %2646 = vmatpush.msra.mxu0 0.0
        %2647 = vmatpush.msra.mxu0 0.0
        %2648 = vmatpush.msra.mxu0 0.0
        %2649 = vmatpush.msra.mxu0 0.0
        %2650 = vmatpush.msra.mxu0 0.0
        %2651 = vmatpush.msra.mxu0 0.0
        %2652 = vmatpush.msra.mxu0 0.0
        %2653 = vmatpush.msra.mxu0 0.0
        %v2654 = vand.u32 %v1012, 4294901760
        %v2655 = vsub.f32 %v1012, %v2654
        %2656 = vmatpush.msra.mxu0 %v2655
        %v2657 = vand.u32 %v1011, 4294901760
        %v2658 = vsub.f32 %v1011, %v2657
        %2659 = vmatpush.msra.mxu0 %v2658
        %v2660 = vand.u32 %v2535, 4294901760
        %v2661 = vsub.f32 %v2535, %v2660
        %2662 = vmatmul.f32.gmra.mxu0 %v2661
        %v2663 = vpop.f32.mrf.mxu0
        %v2664 = vadd.f32 %v2626, %v2663
        %v2665 = vand.u32 %v2538, 4294901760
        %v2666 = vsub.f32 %v2538, %v2665
        %2667 = vmatmul.f32.gmra.mxu0 %v2666
        %v2668 = vpop.f32.mrf.mxu0
        %v2669 = vadd.f32 %v2630, %v2668
        %v2670 = vand.u32 %v2541, 4294901760
        %v2671 = vsub.f32 %v2541, %v2670
        %2672 = vmatmul.f32.gmra.mxu0 %v2671
        %v2673 = vpop.f32.mrf.mxu0
        %v2674 = vadd.f32 %v2634, %v2673
        %v2675 = vand.u32 %v2544, 4294901760
        %v2676 = vsub.f32 %v2544, %v2675
        %2677 = vmatmul.f32.gmra.mxu0 %v2676
        %v2678 = vpop.f32.mrf.mxu0
        %v2679 = vadd.f32 %v2638, %v2678
        %2680 = vdwg.mxu0
        %2681 = vmatpush.msra.mxu0 0.0
        %2682 = vmatpush.msra.mxu0 0.0
        %2683 = vmatpush.msra.mxu0 0.0
        %2684 = vmatpush.msra.mxu0 0.0
        %2685 = vmatpush.msra.mxu0 0.0
        %2686 = vmatpush.msra.mxu0 0.0
        %2687 = vmatpush.msra.mxu0 0.0
        %2688 = vmatpush.msra.mxu0 0.0
        %2689 = vmatpush.msra.mxu0 0.0
        %2690 = vmatpush.msra.mxu0 0.0
        %2691 = vmatpush.msra.mxu0 0.0
        %2692 = vmatpush.msra.mxu0 0.0
        %2693 = vmatpush.msra.mxu0 0.0
        %2694 = vmatpush.msra.mxu0 0.0
        %v2695 = vand.u32 %v1012, 4294901760
        %2696 = vmatpush.msra.mxu0 %v2695
        %v2697 = vand.u32 %v1011, 4294901760
        %2698 = vmatpush.msra.mxu0 %v2697
        %v2699 = vand.u32 %v2535, 4294901760
        %v2700 = vsub.f32 %v2535, %v2699
        %v2701 = vand.u32 %v2700, 4294901760
        %2702 = vmatmul.f32.gmra.mxu0 %v2701
        %v2703 = vpop.f32.mrf.mxu0
        %v2704 = vadd.f32 %v2664, %v2703
        %v2705 = vand.u32 %v2538, 4294901760
        %v2706 = vsub.f32 %v2538, %v2705
        %v2707 = vand.u32 %v2706, 4294901760
        %2708 = vmatmul.f32.gmra.mxu0 %v2707
        %v2709 = vpop.f32.mrf.mxu0
        %v2710 = vadd.f32 %v2669, %v2709
        %v2711 = vand.u32 %v2541, 4294901760
        %v2712 = vsub.f32 %v2541, %v2711
        %v2713 = vand.u32 %v2712, 4294901760
        %2714 = vmatmul.f32.gmra.mxu0 %v2713
        %v2715 = vpop.f32.mrf.mxu0
        %v2716 = vadd.f32 %v2674, %v2715
        %v2717 = vand.u32 %v2544, 4294901760
        %v2718 = vsub.f32 %v2544, %v2717
        %v2719 = vand.u32 %v2718, 4294901760
        %2720 = vmatmul.f32.gmra.mxu0 %v2719
        %v2721 = vpop.f32.mrf.mxu0
        %v2722 = vadd.f32 %v2679, %v2721
        %2723 = vdwg.mxu0
        %2724 = vmatpush.msra.mxu0 0.0
        %2725 = vmatpush.msra.mxu0 0.0
        %2726 = vmatpush.msra.mxu0 0.0
        %2727 = vmatpush.msra.mxu0 0.0
        %2728 = vmatpush.msra.mxu0 0.0
        %2729 = vmatpush.msra.mxu0 0.0
        %2730 = vmatpush.msra.mxu0 0.0
        %2731 = vmatpush.msra.mxu0 0.0
        %2732 = vmatpush.msra.mxu0 0.0
        %2733 = vmatpush.msra.mxu0 0.0
        %2734 = vmatpush.msra.mxu0 0.0
        %2735 = vmatpush.msra.mxu0 0.0
        %2736 = vmatpush.msra.mxu0 0.0
        %2737 = vmatpush.msra.mxu0 0.0
        %v2738 = vand.u32 %v1012, 4294901760
        %v2739 = vsub.f32 %v1012, %v2738
        %v2740 = vand.u32 %v2739, 4294901760
        %2741 = vmatpush.msra.mxu0 %v2740
        %v2742 = vand.u32 %v1011, 4294901760
        %v2743 = vsub.f32 %v1011, %v2742
        %v2744 = vand.u32 %v2743, 4294901760
        %2745 = vmatpush.msra.mxu0 %v2744
        %v2746 = vand.u32 %v2535, 4294901760
        %2747 = vmatmul.f32.gmra.mxu0 %v2746
        %v2748 = vpop.f32.mrf.mxu0
        %v2749 = vadd.f32 %v2704, %v2748
        %v2750 = vand.u32 %v2538, 4294901760
        %2751 = vmatmul.f32.gmra.mxu0 %v2750
        %v2752 = vpop.f32.mrf.mxu0
        %v2753 = vadd.f32 %v2710, %v2752
        %v2754 = vand.u32 %v2541, 4294901760
        %2755 = vmatmul.f32.gmra.mxu0 %v2754
        %v2756 = vpop.f32.mrf.mxu0
        %v2757 = vadd.f32 %v2716, %v2756
        %v2758 = vand.u32 %v2544, 4294901760
        %2759 = vmatmul.f32.gmra.mxu0 %v2758
        %v2760 = vpop.f32.mrf.mxu0
        %v2761 = vadd.f32 %v2722, %v2760
        %2762 = vdwg.mxu0
        %2763 = vmatpush.msra.mxu0 0.0
        %2764 = vmatpush.msra.mxu0 0.0
        %2765 = vmatpush.msra.mxu0 0.0
        %2766 = vmatpush.msra.mxu0 0.0
        %2767 = vmatpush.msra.mxu0 0.0
        %2768 = vmatpush.msra.mxu0 0.0
        %2769 = vmatpush.msra.mxu0 0.0
        %2770 = vmatpush.msra.mxu0 0.0
        %2771 = vmatpush.msra.mxu0 0.0
        %2772 = vmatpush.msra.mxu0 0.0
        %2773 = vmatpush.msra.mxu0 0.0
        %2774 = vmatpush.msra.mxu0 0.0
        %2775 = vmatpush.msra.mxu0 0.0
        %2776 = vmatpush.msra.mxu0 0.0
        %v2777 = vand.u32 %v1012, 4294901760
        %2778 = vmatpush.msra.mxu0 %v2777
        %v2779 = vand.u32 %v1011, 4294901760
        %2780 = vmatpush.msra.mxu0 %v2779
        %v2781 = vand.u32 %v2535, 4294901760
        %2782 = vmatmul.f32.gmra.mxu0 %v2781
        %v2783 = vpop.f32.mrf.mxu0
        %v2784 = vadd.f32 %v2749, %v2783
        %v2785 = vand.u32 %v2538, 4294901760
        %2786 = vmatmul.f32.gmra.mxu0 %v2785
        %v2787 = vpop.f32.mrf.mxu0
        %v2788 = vadd.f32 %v2753, %v2787
        %v2789 = vand.u32 %v2541, 4294901760
        %2790 = vmatmul.f32.gmra.mxu0 %v2789
        %v2791 = vpop.f32.mrf.mxu0
        %v2792 = vadd.f32 %v2757, %v2791
        %v2793 = vand.u32 %v2544, 4294901760
        %2794 = vmatmul.f32.gmra.mxu0 %v2793
        %v2795 = vpop.f32.mrf.mxu0
        %v2796 = vadd.f32 %v2761, %v2795
        %2797 = vdwg.mxu0
        %v2799 = vrot.slane %v1397, 1
        %v2800 = vrot.slane %v1397, 2
        %v2801 = vrot.slane %v1397, 3
        %v2802 = vrot.slane %v1397, 4
        %v2803 = vperm.slane %v1397, 0
        %v2804 = vperm.slane %v2799, 0
        %v2805 = vperm.slane %v2800, 0
        %v2806 = vperm.slane %v2801, 0
        %v2807 = vperm.slane %v2802, 0
        %2813 = vset.pattern.permute.xlu0 1
        %2814 = vperm.xlu0 %2813, %v1419
        %v2815 = vpop.permute.xlu0 %2814
        %2817 = vset.pattern.permute.xlu0 1
        %2818 = vperm.xlu0 %2817, %v1420
        %v2819 = vpop.permute.xlu0 %2818
        %2821 = vset.pattern.permute.xlu0 1
        %2822 = vperm.xlu0 %2821, %v1421
        %v2823 = vpop.permute.xlu0 %2822
        %2825 = vset.pattern.permute.xlu0 1
        %2826 = vperm.xlu0 %2825, %v1422
        %v2827 = vpop.permute.xlu0 %2826
        %v2829 = vmul.f32 %v2803, %v2815
        %v2830 = vmul.f32 %v2803, %v2819
        %v2831 = vmul.f32 %v2803, %v2823
        %v2832 = vmul.f32 %v2803, %v2827
        %v2833 = vmul.f32 %v2804, %v2815
        %v2834 = vmul.f32 %v2804, %v2819
        %v2835 = vmul.f32 %v2804, %v2823
        %v2836 = vmul.f32 %v2804, %v2827
        %v2837 = vmul.f32 %v2805, %v2815
        %v2838 = vmul.f32 %v2805, %v2819
        %v2839 = vmul.f32 %v2805, %v2823
        %v2840 = vmul.f32 %v2805, %v2827
        %v2841 = vmul.f32 %v2806, %v2815
        %v2842 = vmul.f32 %v2806, %v2819
        %v2843 = vmul.f32 %v2806, %v2823
        %v2844 = vmul.f32 %v2806, %v2827
        %v2845 = vmul.f32 %v2807, %v2815
        %v2846 = vmul.f32 %v2807, %v2819
        %v2847 = vmul.f32 %v2807, %v2823
        %v2848 = vmul.f32 %v2807, %v2827
        %v2849 = vadd.f32 %v1728, %v2829
        %v2850 = vadd.f32 %v1732, %v2830
        %v2851 = vadd.f32 %v1736, %v2831
        %v2852 = vadd.f32 %v1740, %v2832
        %v2853 = vadd.f32 %v1992, %v2833
        %v2854 = vadd.f32 %v1996, %v2834
        %v2855 = vadd.f32 %v2000, %v2835
        %v2856 = vadd.f32 %v2004, %v2836
        %v2857 = vadd.f32 %v2256, %v2837
        %v2858 = vadd.f32 %v2260, %v2838
        %v2859 = vadd.f32 %v2264, %v2839
        %v2860 = vadd.f32 %v2268, %v2840
        %v2861 = vadd.f32 %v2520, %v2841
        %v2862 = vadd.f32 %v2524, %v2842
        %v2863 = vadd.f32 %v2528, %v2843
        %v2864 = vadd.f32 %v2532, %v2844
        %v2865 = vadd.f32 %v2784, %v2845
        %v2866 = vadd.f32 %v2788, %v2846
        %v2867 = vadd.f32 %v2792, %v2847
        %v2868 = vadd.f32 %v2796, %v2848
        %vm2869 = vcmask 261120
        %2870 = vst.msk [vmem:[%s333] sm:$0xff] %vm2869, %v2849
        %2871 = vst.msk [vmem:[%s333 + $0x8] sm:$0xff] %vm2869, %v2850
        %2872 = vst.msk [vmem:[%s333 + $0x10] sm:$0xff] %vm2869, %v2851
        %2873 = vst.msk [vmem:[%s333 + $0x18] sm:$0xff] %vm2869, %v2852
        %2874 = vst.msk [vmem:[%s333 + $0x20] sm:$0xff] %vm2869, %v2853
        %2875 = vst.msk [vmem:[%s333 + $0x28] sm:$0xff] %vm2869, %v2854
        %2876 = vst.msk [vmem:[%s333 + $0x30] sm:$0xff] %vm2869, %v2855
        %2877 = vst.msk [vmem:[%s333 + $0x38] sm:$0xff] %vm2869, %v2856
        %2878 = vst.msk [vmem:[%s333 + $0x40] sm:$0xff] %vm2869, %v2857
        %2879 = vst.msk [vmem:[%s333 + $0x48] sm:$0xff] %vm2869, %v2858
        %2880 = vst.msk [vmem:[%s333 + $0x50] sm:$0xff] %vm2869, %v2859
        %2881 = vst.msk [vmem:[%s333 + $0x58] sm:$0xff] %vm2869, %v2860
        %2882 = vst.msk [vmem:[%s333 + $0x60] sm:$0xff] %vm2869, %v2861
        %2883 = vst.msk [vmem:[%s333 + $0x68] sm:$0xff] %vm2869, %v2862
        %2884 = vst.msk [vmem:[%s333 + $0x70] sm:$0xff] %vm2869, %v2863
        %2885 = vst.msk [vmem:[%s333 + $0x78] sm:$0xff] %vm2869, %v2864
        %2886 = vst.msk [vmem:[%s333 + $0x80] sm:$0xff] %vm2869, %v2865
        %2887 = vst.msk [vmem:[%s333 + $0x88] sm:$0xff] %vm2869, %v2866
        %2888 = vst.msk [vmem:[%s333 + $0x90] sm:$0xff] %vm2869, %v2867
        %2889 = vst.msk [vmem:[%s333 + $0x98] sm:$0xff] %vm2869, %v2868
        %s2890 = sand.u32 %s213, 1
        %s2891 = scalar_lea.sflag [#allocation3], %s2890
        %s2892 = sand.u32 %s213, 1
        %s2893 = smul.addr %s2892, 160
        %s2894 = scalar_lea.vmem [#allocation2], %s2893
        // Predicated region
        $region53: #{tpu_custom_call.1} parent=51 // pred_check
          %p2895 = pneg %p223
        $region54: #{tpu_custom_call.1} parent=51 // pred_check_branch
          %2897 = sbr.rel (%p2895) target = $region56
        $region55: #{tpu_custom_call.1} parent=51 // pred_region
          %s2898 = smul.u32 5, %s22
          %2900 = vsyncadd %s2891, 0
          %s2901 = smul.addr %s2898, 4
          %s2902 = smul.addr %s2901, 8
          %s2903 = scalar_lea.hbm %s8, %s2902
          %s2904 = sshll.u32 %s2894, 4
          %s2905 = int_to_ptr.vmem [resolvable:$true] %s2904
          %s2906 = sshll.u32 %s2903, 4
          %s2907 = int_to_ptr.hbm [resolvable:$true] %s2906
          %2912 = dma.vmem_to_hbm [thread:$0]  %s2905, 2560, %s2907, %s2891, 128, 128, 8
        $region56: #{tpu_custom_call.1} parent=51 // pred_fallthru
          _
      $region52: #{tpu_custom_call.1} parent=5 // pred_fallthru
        _
      %p2913 = scmp.le.s32.totalorder 2, %s17
      // Predicated region
      $region57: #{tpu_custom_call.1} parent=5 // pred_check
        %p2914 = pneg %p2913
      $region58: #{tpu_custom_call.1} parent=5 // pred_check_branch
        %2916 = sbr.rel (%p2914) target = $region60
      $region59: #{tpu_custom_call.1} parent=5 // pred_region
        %s2917 = ssub.s32 %s17, 2
        // Predicated region
        $region61: #{tpu_custom_call.1} parent=59 // pred_check
          %p2918 = pneg %p229
        $region62: #{tpu_custom_call.1} parent=59 // pred_check_branch
          %2920 = sbr.rel (%p2918) target = $region64
        $region63: #{tpu_custom_call.1} parent=59 // pred_region
          %s2921 = sand.u32 %s214, 1
          %s2922 = scalar_lea.sflag [#allocation3], %s2921
          %s2923 = sand.u32 %s214, 1
          %s2924 = smul.addr %s2923, 160
          %s2925 = scalar_lea.vmem [#allocation2], %s2924
          %2927 = dma.done %s2922, 2560
        $region64: #{tpu_custom_call.1} parent=59 // pred_fallthru
          _
      $region60: #{tpu_custom_call.1} parent=5 // pred_fallthru
        _
    $region6: #{tpu_custom_call.1} parent=1 // loop_footer
      %s21 = sadd.s32 1, %s17
    $region7: #{tpu_custom_call.1} parent=1 // loop_footer_branch
      %16 = sbr.rel target = $region3
    $region8: #{tpu_custom_call.1} parent=1 // loop_exit
      _
    %2928 = vsyncpa [#allocation3], 1
    %s2929 = scalar_lea.sflag [#allocation3], 1
    %2930 = vsyncpa %s2929, 1

</llo_original>
